<compile_context>
chip_gen: v7x
topology: tpu7x:2x2x1
jax: 0.10.0
libtpu: 0.0.40
codegen_flags: <defaults>
</compile_context>

<pallas_src>
import re
import numpy as np

import jax
import jax.numpy as jnp
from jax.experimental import pallas as pl
from jax.experimental.pallas import tpu as pltpu

TOPK = 5
OUT_ROWS = 8          # TOPK padded to a full sublane group
LANE = 128


def _make_topk_kernel(num_labels):
    """Kernel over one [Lp, Tt] tile: labels on sublanes, timesteps on lanes."""

    def kernel(em_ref, vals_ref, idx_ref):
        x = em_ref[...].astype(jnp.float32)                      # (Lp, Tt)
        Lp, Tt = x.shape
        row = jax.lax.broadcasted_iota(jnp.int32, (Lp, Tt), 0)   # label index

        # Deterministic padding rows (5..7) of the lane-dense output block.
        vals_ref[pl.ds(TOPK, OUT_ROWS - TOPK), :] = jnp.zeros(
            (OUT_ROWS - TOPK, Tt), jnp.float32)
        idx_ref[pl.ds(TOPK, OUT_ROWS - TOPK), :] = jnp.zeros(
            (OUT_ROWS - TOPK, Tt), jnp.int32)

        for k in range(TOPK):
            # max over labels: elementwise vmax across a few vregs + short
            # sublane tree (exact values preserved).
            m = jnp.max(x, axis=0, keepdims=True)                        # (1, Tt)
            hit = x == m
            # first-occurrence argmax (torch.topk-style tie-break).
            i = jnp.min(jnp.where(hit, row, Lp), axis=0, keepdims=True)  # (1, Tt)
            # NaN / sentinel guard: never emit an index >= num_labels.
            i = jnp.minimum(i, num_labels - 1)
            # lane-dense single-row stores, no concatenation.
            vals_ref[pl.ds(k, 1), :] = m
            idx_ref[pl.ds(k, 1), :] = i
            # knock out the winner for the next round.
            x = jnp.where(row == i, -jnp.inf, x)

    return kernel


def _topk5_impl(emission_2d):
    """Top-5 values and indices along the label axis for each timestep.

    emission_2d: [T, L] logits.  Returns (values[T, 5] f32, indices[T, 5] i32),
    sorted descending per timestep (matching torch.topk).
    """
    T, L = emission_2d.shape
    Lp = max(8, ((L + 7) // 8) * 8)                    # labels -> sublane multiple of 8
    if T > 512:
        t_tile = 512
    else:
        t_tile = max(LANE, ((T + LANE - 1) // LANE) * LANE)
    Tp = ((T + t_tile - 1) // t_tile) * t_tile         # timesteps -> lane-tile multiple

    # TODO(synk): if emissions arrive as bf16, a bf16 compute path (v6e/v7x)
    # would double vreg density; f32 kept here for exact parity on all chips.
    em_t = jnp.transpose(emission_2d.astype(jnp.float32))          # (L, T)
    em_t = jnp.pad(em_t, ((0, Lp - L), (0, Tp - T)),
                   constant_values=-jnp.inf)                       # (Lp, Tp)

    vals_p, idx_p = pl.pallas_call(
        _make_topk_kernel(L),
        out_shape=(
            jax.ShapeDtypeStruct((OUT_ROWS, Tp), jnp.float32),
            jax.ShapeDtypeStruct((OUT_ROWS, Tp), jnp.int32),
        ),
        grid_spec=pltpu.PrefetchScalarGridSpec(
            num_scalar_prefetch=0,
            grid=(Tp // t_tile,),
            in_specs=[pl.BlockSpec((Lp, t_tile), lambda t: (0, t))],
            out_specs=(
                pl.BlockSpec((OUT_ROWS, t_tile), lambda t: (0, t)),
                pl.BlockSpec((OUT_ROWS, t_tile), lambda t: (0, t)),
            ),
        ),
        compiler_params=pltpu.CompilerParams(
            dimension_semantics=("parallel",)),   # v7x: shard time tiles over 2 TCs
    )(em_t)

    # Back to torch.topk layout: (T, 5).
    vals = jnp.transpose(vals_p[:TOPK, :T])
    idxs = jnp.transpose(idx_p[:TOPK, :T])
    return vals, idxs


topk5 = jax.jit(_topk5_impl)


# ----------------------- host-side (string) glue -----------------------------

def sanitize_sentence(sentence):
    # TODO(synk): original sanitize_sentence is not provided; this is a
    # reasonable stand-in (uppercase, keep letters/apostrophe/space).
    s = sentence.upper()
    s = re.sub(r"[^A-Z' ]", "", s)
    s = re.sub(r"\s+", " ", s).strip()
    return s


def edit_distance(a, b):
    """Word-level Levenshtein distance (torchaudio.functional.edit_distance)."""
    m, n = len(a), len(b)
    dp = list(range(n + 1))
    for i in range(1, m + 1):
        prev = dp[0]
        dp[0] = i
        for j in range(1, n + 1):
            cur = dp[j]
            dp[j] = min(dp[j] + 1, dp[j - 1] + 1, prev + (a[i - 1] != b[j - 1]))
            prev = cur
    return dp[n]


class GreedyHypothesis:
    def __init__(self, char_hypothesis):
        words = []
        curr_word = ''
        for c in [h['char'] for h in char_hypothesis]:
            if c == '|':
                words.append(curr_word)
                curr_word = ''
            else:
                curr_word += c
        self.words = words
        self.timesteps = jnp.asarray([h['idx'] for h in char_hypothesis], dtype=jnp.int32)
        self.tokens = [h['char'] for h in char_hypothesis]


class GreedyCTCDecoder:
    def __init__(self, labels, blank=0):
        self.labels = labels
        self.blank = blank
        self.label_map = {self.labels[i]: i for i in range(len(self.labels))}

    def idxs_to_tokens(self, tokens):
        return tokens

    def forward(self, emission, sentence):
        # emission: [batch, num_seq, num_label]; forward uses emission[0]
        san_sentence = sanitize_sentence(sentence)
        text = san_sentence.replace(' ', '|')
        em0 = emission[0]

        # Hot path on TPU: top-5 logits per timestep (single pallas_call,
        # single host round-trip for the whole utterance).
        vals_d, idxs_d = topk5(em0)
        vals = jax.device_get(vals_d)
        idxs = jax.device_get(idxs_d)

        def safe_char(idx):
            if idx < 0 or idx >= len(text):
                return ''
            return text[idx]

        char_idx = 0
        char_hypothesis = []
        hypothesis_history = []
        for i in range(em0.shape[0]):
            token_options = [(self.labels[int(j)], float(v))
                             for j, v in zip(idxs[i], vals[i])]
            token_options.sort(key=lambda x: x[1], reverse=True)
            token_options_labels = [h[0] for h in token_options]
            if safe_char(char_idx) in token_options_labels:
                char_hypothesis.append(
                    {'char': text[char_idx], 'idx': i, 'hyp': token_options})
                char_idx += 1
            hypothesis_history.append(token_options)

        greedy_hypothesis = GreedyHypothesis(char_hypothesis=char_hypothesis)
        original_words = san_sentence.split(' ')
        ed = edit_distance(original_words, greedy_hypothesis.words)
        return greedy_hypothesis, ed


if __name__ == "__main__":
    # wav2vec2-style character label set (deterministic, defined in-script)
    labels = ['-', '|', 'E', 'T', 'A', 'O', 'N', 'I', 'H', 'S', 'R', 'D', 'L',
              'U', 'M', 'W', 'C', 'F', 'G', 'Y', 'P', 'B', 'V', 'K', "'", 'X',
              'J', 'Q', 'Z']
    num_label = len(labels)   # 29
    num_seq = 8
    batch = 1

    key = jax.random.PRNGKey(0)
    k0, k1 = jax.random.split(key)
    emission = jax.random.normal(k0, (batch, num_seq, num_label), dtype=jnp.float32)

    # 1) Correctness check of the Pallas kernel against lax.top_k on a larger
    #    T (640 -> padded to 1024, grid of 2 time tiles exercises pipelining
    #    and padding).  Random normals => no ties, so indices match exactly.
    em_big = jax.random.normal(k1, (640, num_label), dtype=jnp.float32)
    vals_big, idxs_big = topk5(em_big)
    jax.block_until_ready((vals_big, idxs_big))
    ref_vals, ref_idxs = jax.lax.top_k(em_big, TOPK)
    np.testing.assert_allclose(np.asarray(vals_big), np.asarray(ref_vals),
                               rtol=0, atol=0)
    np.testing.assert_array_equal(np.asarray(idxs_big), np.asarray(ref_idxs))

    # 2) Run the kernel on the module-sized input and block on its result.
    vals, idxs = topk5(emission[0])
    jax.block_until_ready((vals, idxs))

    # 3) Full forward pass (host string glue + TPU top-k hot path).
    decoder = GreedyCTCDecoder(labels=labels, blank=0)
    hyp, ed = decoder.forward(emission, "hello world")
    jax.block_until_ready(hyp.timesteps)

    print("KERNEL_OK")
</pallas_src>

<mosaic_0001>
module attributes {stable_mosaic.version = 11 : i64} {
  func.func @kernel(%arg0: i32, %arg1: memref<32x512xf32, #tpu.memory_space<vmem>>, %arg2: memref<8x512xf32, #tpu.memory_space<vmem>>, %arg3: memref<8x512xi32, #tpu.memory_space<vmem>>) attributes {dimension_semantics = [#tpu.dimension_semantics<parallel>], iteration_bounds = array<i64: 2>, scalar_prefetch = 0 : i64, scratch_operands = 0 : i64, tpu.core_type = #tpu.core_type<tc>, window_params = [{transform_indices = @transform_0, window_bounds = array<i64: 32, 512>}, {transform_indices = @transform_1, window_bounds = array<i64: 8, 512>}, {transform_indices = @transform_2, window_bounds = array<i64: 8, 512>}]} {
    %c0 = arith.constant 0 : index
    %c0_0 = arith.constant 0 : index
    %0 = vector.load %arg1[%c0, %c0_0] : memref<32x512xf32, #tpu.memory_space<vmem>>, vector<32x512xf32>
    %1 = tpu.iota {dimensions = array<i32: 0>} : vector<32x512xi32>
    %cst = arith.constant 0.000000e+00 : f32
    %2 = vector.broadcast %cst : f32 to vector<3x512xf32>
    %c5 = arith.constant 5 : index
    %c0_1 = arith.constant 0 : index
    %3 = vector.load %arg2[%c5, %c0_1] : memref<8x512xf32, #tpu.memory_space<vmem>>, vector<3x512xf32>
    tpu.vector_store %arg2[%c5, %c0_1], %2 {strides = array<i32>} : memref<8x512xf32, #tpu.memory_space<vmem>>, vector<3x512xf32>,
    %c0_i32 = arith.constant 0 : i32
    %4 = vector.broadcast %c0_i32 : i32 to vector<3x512xi32>
    %c5_2 = arith.constant 5 : index
    %c0_3 = arith.constant 0 : index
    %5 = vector.load %arg3[%c5_2, %c0_3] : memref<8x512xi32, #tpu.memory_space<vmem>>, vector<3x512xi32>
    tpu.vector_store %arg3[%c5_2, %c0_3], %4 {strides = array<i32>} : memref<8x512xi32, #tpu.memory_space<vmem>>, vector<3x512xi32>,
    %cst_4 = arith.constant dense<0xFF800000> : vector<512xf32>
    %6 = vector.multi_reduction <maximumf>, %0, %cst_4 [0] : vector<32x512xf32> to vector<512xf32>
    %7 = vector.shape_cast %6 : vector<512xf32> to vector<1x512xf32>
    %8 = vector.broadcast %7 : vector<1x512xf32> to vector<32x512xf32>
    %9 = arith.cmpf oeq, %0, %8 : vector<32x512xf32>
    %c32_i32 = arith.constant 32 : i32
    %10 = vector.broadcast %c32_i32 : i32 to vector<32x512xi32>
    %11 = arith.select %9, %1, %10 : vector<32x512xi1>, vector<32x512xi32>
    %cst_5 = arith.constant dense<2147483647> : vector<512xi32>
    %12 = vector.multi_reduction <minsi>, %11, %cst_5 [0] : vector<32x512xi32> to vector<512xi32>
    %13 = vector.shape_cast %12 : vector<512xi32> to vector<1x512xi32>
    %c28_i32 = arith.constant 28 : i32
    %14 = vector.broadcast %c28_i32 : i32 to vector<1x512xi32>
    %15 = arith.minsi %13, %14 : vector<1x512xi32>
    %c0_6 = arith.constant 0 : index
    %c0_7 = arith.constant 0 : index
    %16 = vector.load %arg2[%c0_6, %c0_7] : memref<8x512xf32, #tpu.memory_space<vmem>>, vector<1x512xf32>
    tpu.vector_store %arg2[%c0_6, %c0_7], %7 {strides = array<i32>} : memref<8x512xf32, #tpu.memory_space<vmem>>, vector<1x512xf32>,
    %c0_8 = arith.constant 0 : index
    %c0_9 = arith.constant 0 : index
    %17 = vector.load %arg3[%c0_8, %c0_9] : memref<8x512xi32, #tpu.memory_space<vmem>>, vector<1x512xi32>
    tpu.vector_store %arg3[%c0_8, %c0_9], %15 {strides = array<i32>} : memref<8x512xi32, #tpu.memory_space<vmem>>, vector<1x512xi32>,
    %18 = vector.broadcast %15 : vector<1x512xi32> to vector<32x512xi32>
    %19 = arith.cmpi eq, %1, %18 : vector<32x512xi32>
    %cst_10 = arith.constant 0xFF800000 : f32
    %20 = vector.broadcast %cst_10 : f32 to vector<32x512xf32>
    %21 = arith.select %19, %20, %0 : vector<32x512xi1>, vector<32x512xf32>
    %cst_11 = arith.constant dense<0xFF800000> : vector<512xf32>
    %22 = vector.multi_reduction <maximumf>, %21, %cst_11 [0] : vector<32x512xf32> to vector<512xf32>
    %23 = vector.shape_cast %22 : vector<512xf32> to vector<1x512xf32>
    %24 = vector.broadcast %23 : vector<1x512xf32> to vector<32x512xf32>
    %25 = arith.cmpf oeq, %21, %24 : vector<32x512xf32>
    %c32_i32_12 = arith.constant 32 : i32
    %26 = vector.broadcast %c32_i32_12 : i32 to vector<32x512xi32>
    %27 = arith.select %25, %1, %26 : vector<32x512xi1>, vector<32x512xi32>
    %cst_13 = arith.constant dense<2147483647> : vector<512xi32>
    %28 = vector.multi_reduction <minsi>, %27, %cst_13 [0] : vector<32x512xi32> to vector<512xi32>
    %29 = vector.shape_cast %28 : vector<512xi32> to vector<1x512xi32>
    %c28_i32_14 = arith.constant 28 : i32
    %30 = vector.broadcast %c28_i32_14 : i32 to vector<1x512xi32>
    %31 = arith.minsi %29, %30 : vector<1x512xi32>
    %c1 = arith.constant 1 : index
    %c0_15 = arith.constant 0 : index
    %32 = vector.load %arg2[%c1, %c0_15] : memref<8x512xf32, #tpu.memory_space<vmem>>, vector<1x512xf32>
    tpu.vector_store %arg2[%c1, %c0_15], %23 {strides = array<i32>} : memref<8x512xf32, #tpu.memory_space<vmem>>, vector<1x512xf32>,
    %c1_16 = arith.constant 1 : index
    %c0_17 = arith.constant 0 : index
    %33 = vector.load %arg3[%c1_16, %c0_17] : memref<8x512xi32, #tpu.memory_space<vmem>>, vector<1x512xi32>
    tpu.vector_store %arg3[%c1_16, %c0_17], %31 {strides = array<i32>} : memref<8x512xi32, #tpu.memory_space<vmem>>, vector<1x512xi32>,
    %34 = vector.broadcast %31 : vector<1x512xi32> to vector<32x512xi32>
    %35 = arith.cmpi eq, %1, %34 : vector<32x512xi32>
    %cst_18 = arith.constant 0xFF800000 : f32
    %36 = vector.broadcast %cst_18 : f32 to vector<32x512xf32>
    %37 = arith.select %35, %36, %21 : vector<32x512xi1>, vector<32x512xf32>
    %cst_19 = arith.constant dense<0xFF800000> : vector<512xf32>
    %38 = vector.multi_reduction <maximumf>, %37, %cst_19 [0] : vector<32x512xf32> to vector<512xf32>
    %39 = vector.shape_cast %38 : vector<512xf32> to vector<1x512xf32>
    %40 = vector.broadcast %39 : vector<1x512xf32> to vector<32x512xf32>
    %41 = arith.cmpf oeq, %37, %40 : vector<32x512xf32>
    %c32_i32_20 = arith.constant 32 : i32
    %42 = vector.broadcast %c32_i32_20 : i32 to vector<32x512xi32>
    %43 = arith.select %41, %1, %42 : vector<32x512xi1>, vector<32x512xi32>
    %cst_21 = arith.constant dense<2147483647> : vector<512xi32>
    %44 = vector.multi_reduction <minsi>, %43, %cst_21 [0] : vector<32x512xi32> to vector<512xi32>
    %45 = vector.shape_cast %44 : vector<512xi32> to vector<1x512xi32>
    %c28_i32_22 = arith.constant 28 : i32
    %46 = vector.broadcast %c28_i32_22 : i32 to vector<1x512xi32>
    %47 = arith.minsi %45, %46 : vector<1x512xi32>
    %c2 = arith.constant 2 : index
    %c0_23 = arith.constant 0 : index
    %48 = vector.load %arg2[%c2, %c0_23] : memref<8x512xf32, #tpu.memory_space<vmem>>, vector<1x512xf32>
    tpu.vector_store %arg2[%c2, %c0_23], %39 {strides = array<i32>} : memref<8x512xf32, #tpu.memory_space<vmem>>, vector<1x512xf32>,
    %c2_24 = arith.constant 2 : index
    %c0_25 = arith.constant 0 : index
    %49 = vector.load %arg3[%c2_24, %c0_25] : memref<8x512xi32, #tpu.memory_space<vmem>>, vector<1x512xi32>
    tpu.vector_store %arg3[%c2_24, %c0_25], %47 {strides = array<i32>} : memref<8x512xi32, #tpu.memory_space<vmem>>, vector<1x512xi32>,
    %50 = vector.broadcast %47 : vector<1x512xi32> to vector<32x512xi32>
    %51 = arith.cmpi eq, %1, %50 : vector<32x512xi32>
    %cst_26 = arith.constant 0xFF800000 : f32
    %52 = vector.broadcast %cst_26 : f32 to vector<32x512xf32>
    %53 = arith.select %51, %52, %37 : vector<32x512xi1>, vector<32x512xf32>
    %cst_27 = arith.constant dense<0xFF800000> : vector<512xf32>
    %54 = vector.multi_reduction <maximumf>, %53, %cst_27 [0] : vector<32x512xf32> to vector<512xf32>
    %55 = vector.shape_cast %54 : vector<512xf32> to vector<1x512xf32>
    %56 = vector.broadcast %55 : vector<1x512xf32> to vector<32x512xf32>
    %57 = arith.cmpf oeq, %53, %56 : vector<32x512xf32>
    %c32_i32_28 = arith.constant 32 : i32
    %58 = vector.broadcast %c32_i32_28 : i32 to vector<32x512xi32>
    %59 = arith.select %57, %1, %58 : vector<32x512xi1>, vector<32x512xi32>
    %cst_29 = arith.constant dense<2147483647> : vector<512xi32>
    %60 = vector.multi_reduction <minsi>, %59, %cst_29 [0] : vector<32x512xi32> to vector<512xi32>
    %61 = vector.shape_cast %60 : vector<512xi32> to vector<1x512xi32>
    %c28_i32_30 = arith.constant 28 : i32
    %62 = vector.broadcast %c28_i32_30 : i32 to vector<1x512xi32>
    %63 = arith.minsi %61, %62 : vector<1x512xi32>
    %c3 = arith.constant 3 : index
    %c0_31 = arith.constant 0 : index
    %64 = vector.load %arg2[%c3, %c0_31] : memref<8x512xf32, #tpu.memory_space<vmem>>, vector<1x512xf32>
    tpu.vector_store %arg2[%c3, %c0_31], %55 {strides = array<i32>} : memref<8x512xf32, #tpu.memory_space<vmem>>, vector<1x512xf32>,
    %c3_32 = arith.constant 3 : index
    %c0_33 = arith.constant 0 : index
    %65 = vector.load %arg3[%c3_32, %c0_33] : memref<8x512xi32, #tpu.memory_space<vmem>>, vector<1x512xi32>
    tpu.vector_store %arg3[%c3_32, %c0_33], %63 {strides = array<i32>} : memref<8x512xi32, #tpu.memory_space<vmem>>, vector<1x512xi32>,
    %66 = vector.broadcast %63 : vector<1x512xi32> to vector<32x512xi32>
    %67 = arith.cmpi eq, %1, %66 : vector<32x512xi32>
    %cst_34 = arith.constant 0xFF800000 : f32
    %68 = vector.broadcast %cst_34 : f32 to vector<32x512xf32>
    %69 = arith.select %67, %68, %53 : vector<32x512xi1>, vector<32x512xf32>
    %cst_35 = arith.constant dense<0xFF800000> : vector<512xf32>
    %70 = vector.multi_reduction <maximumf>, %69, %cst_35 [0] : vector<32x512xf32> to vector<512xf32>
    %71 = vector.shape_cast %70 : vector<512xf32> to vector<1x512xf32>
    %72 = vector.broadcast %71 : vector<1x512xf32> to vector<32x512xf32>
    %73 = arith.cmpf oeq, %69, %72 : vector<32x512xf32>
    %c32_i32_36 = arith.constant 32 : i32
    %74 = vector.broadcast %c32_i32_36 : i32 to vector<32x512xi32>
    %75 = arith.select %73, %1, %74 : vector<32x512xi1>, vector<32x512xi32>
    %cst_37 = arith.constant dense<2147483647> : vector<512xi32>
    %76 = vector.multi_reduction <minsi>, %75, %cst_37 [0] : vector<32x512xi32> to vector<512xi32>
    %77 = vector.shape_cast %76 : vector<512xi32> to vector<1x512xi32>
    %c28_i32_38 = arith.constant 28 : i32
    %78 = vector.broadcast %c28_i32_38 : i32 to vector<1x512xi32>
    %79 = arith.minsi %77, %78 : vector<1x512xi32>
    %c4 = arith.constant 4 : index
    %c0_39 = arith.constant 0 : index
    %80 = vector.load %arg2[%c4, %c0_39] : memref<8x512xf32, #tpu.memory_space<vmem>>, vector<1x512xf32>
    tpu.vector_store %arg2[%c4, %c0_39], %71 {strides = array<i32>} : memref<8x512xf32, #tpu.memory_space<vmem>>, vector<1x512xf32>,
    %c4_40 = arith.constant 4 : index
    %c0_41 = arith.constant 0 : index
    %81 = vector.load %arg3[%c4_40, %c0_41] : memref<8x512xi32, #tpu.memory_space<vmem>>, vector<1x512xi32>
    tpu.vector_store %arg3[%c4_40, %c0_41], %79 {strides = array<i32>} : memref<8x512xi32, #tpu.memory_space<vmem>>, vector<1x512xi32>,
    return
  }
  func.func @transform_0(%arg0: i32) -> (i32, i32) {
    %c0_i32 = arith.constant 0 : i32
    %c0_i32_0 = arith.constant 0 : i32
    return %c0_i32, %arg0 : i32, i32
  }
  func.func @transform_1(%arg0: i32) -> (i32, i32) {
    %c0_i32 = arith.constant 0 : i32
    %c0_i32_0 = arith.constant 0 : i32
    return %c0_i32, %arg0 : i32, i32
  }
  func.func @transform_2(%arg0: i32) -> (i32, i32) {
    %c0_i32 = arith.constant 0 : i32
    %c0_i32_0 = arith.constant 0 : i32
    return %c0_i32, %arg0 : i32, i32
  }
}

</mosaic_0001>

<llo_original>
// kernel: _topk5_impl.1
$region0: #{_topk5_impl.1}
  #allocation0 [shape = 'u32[]', space=smem, size = 0x4, offset = 0x4, fixed_abs, tag = 'smem constant byte address 0x4 - core index']
  #allocation1 [shape = 'u32[144,128]{1,0:T(1,128)}', space=vmem, size = 0x12000, scoped, tag = 'internal scratch']
  %s0 = inlined_call_operand.vmem [shape: f32[32,1024], index: 0, kind: input, shape index: {}]
  %s1 = inlined_call_operand.vmem [shape: f32[8,1024], index: 1, kind: output, shape index: {0}]
  %s2 = inlined_call_operand.vmem [shape: s32[8,1024], index: 2, kind: output, shape index: {1}]
  %3 = xla_tuple %s1, %s2
  %s4 = sld [smem:[#allocation0]]
  $region68: #{_topk5_impl.1} parent=0
    _
  %s6 = ssub.s32 1, %s4
  %s7 = scalar_select 0, %s6, %s4
  $region1: #{_topk5_impl.1} parent=0
    #allocation2 [shape = 'u8[131072]{0}', space=vmem, size = 0x20000, scoped, tag = 'input window, operand 0']
    loop: start=0, step=1, limit=4
    $region2: #{_topk5_impl.1} parent=1 // loop_pre_header
      _
    $region3: #{_topk5_impl.1} parent=1 // loop_header
      %s9 = sphi 0, %s13
      %p10 = scmp.ge.s32.totalorder %s9, 4
      %s19 = sphi 0, %s21
      %s22 = sphi 0, %s19
      %s23 = sphi 0, %s22
      %s39 = sphi 0, %s23
      %s45 = sphi 0, %s47
      %s48 = sphi 0, %s45
      %s49 = sphi 0, %s48
      %s65 = sphi 0, %s49
      %s71 = sphi 0, %s73
      %s74 = sphi 0, %s71
      %s75 = sphi 0, %s74
      %s91 = sphi 0, %s75
    $region4: #{_topk5_impl.1} parent=1 // loop_header_branch
      %12 = sbr.rel (%p10) target = $region8
    $region5: #{_topk5_impl.1} parent=1 // loop_body
      %s14 = ssub.s32 %s9, 1
      %s15 = ssub.s32 %s9, 2
      %s16 = sadd.s32 %s9, 1
      %s17 = ssub.s32 %s9, %s16
      %p18 = scmp.eq.s32.totalorder %s17, 0
      %s20 = sadd.s32 %s19, 1
      %s21 = scalar_select %p18, %s19, %s20
      %p24 = pneg %p18
      %p25 = scmp.eq.s32.totalorder %s9, 1
      %p26 = por %p24, %p25
      %p27 = scmp.ne.s32.totalorder %s19, %s22
      %p28 = scmp.eq.s32.totalorder %s9, 0
      %p29 = por %p27, %p28
      %p30 = scmp.ne.s32.totalorder %s19, %s22
      %p31 = scmp.eq.s32.totalorder %s14, 1
      %p32 = por %p30, %p31
      %p33 = scmp.ne.s32.totalorder %s22, %s23
      %p34 = scmp.eq.s32.totalorder %s14, 0
      %p35 = por %p33, %p34
      %p36 = scmp.ne.s32.totalorder %s22, %s23
      %p37 = scmp.eq.s32.totalorder %s15, 1
      %p38 = por %p36, %p37
      %p40 = scmp.ne.s32.totalorder %s23, %s39
      %p41 = scmp.eq.s32.totalorder %s15, 0
      %p42 = por %p40, %p41
      %s43 = ssub.s32 %s9, %s16
      %p44 = scmp.eq.s32.totalorder %s43, 0
      %s46 = sadd.s32 %s45, 1
      %s47 = scalar_select %p44, %s45, %s46
      %p50 = pneg %p44
      %p51 = scmp.eq.s32.totalorder %s9, 1
      %p52 = por %p50, %p51
      %p53 = scmp.ne.s32.totalorder %s45, %s48
      %p54 = scmp.eq.s32.totalorder %s9, 0
      %p55 = por %p53, %p54
      %p56 = scmp.ne.s32.totalorder %s45, %s48
      %p57 = scmp.eq.s32.totalorder %s14, 1
      %p58 = por %p56, %p57
      %p59 = scmp.ne.s32.totalorder %s48, %s49
      %p60 = scmp.eq.s32.totalorder %s14, 0
      %p61 = por %p59, %p60
      %p62 = scmp.ne.s32.totalorder %s48, %s49
      %p63 = scmp.eq.s32.totalorder %s15, 1
      %p64 = por %p62, %p63
      %p66 = scmp.ne.s32.totalorder %s49, %s65
      %p67 = scmp.eq.s32.totalorder %s15, 0
      %p68 = por %p66, %p67
      %s69 = ssub.s32 %s9, %s16
      %p70 = scmp.eq.s32.totalorder %s69, 0
      %s72 = sadd.s32 %s71, 1
      %s73 = scalar_select %p70, %s71, %s72
      %p76 = pneg %p70
      %p77 = scmp.eq.s32.totalorder %s9, 1
      %p78 = por %p76, %p77
      %p79 = scmp.ne.s32.totalorder %s71, %s74
      %p80 = scmp.eq.s32.totalorder %s9, 0
      %p81 = por %p79, %p80
      %p82 = scmp.ne.s32.totalorder %s71, %s74
      %p83 = scmp.eq.s32.totalorder %s14, 1
      %p84 = por %p82, %p83
      %p85 = scmp.ne.s32.totalorder %s74, %s75
      %p86 = scmp.eq.s32.totalorder %s14, 0
      %p87 = por %p85, %p86
      %p88 = scmp.ne.s32.totalorder %s74, %s75
      %p89 = scmp.eq.s32.totalorder %s15, 1
      %p90 = por %p88, %p89
      %p92 = scmp.ne.s32.totalorder %s75, %s91
      %p93 = scmp.eq.s32.totalorder %s15, 0
      %p94 = por %p92, %p93
      %p95 = scmp.le.s32.totalorder 1, %s9
      %p96 = scmp.lt.s32.totalorder %s9, 3
      %p97 = pnand %p95, %p96
      %p98 = pneg %p97
      // Predicated region
      $region9: #{_topk5_impl.1} parent=5 // pred_check
        _
      $region10: #{_topk5_impl.1} parent=5 // pred_check_branch
        %100 = sbr.rel (%p97) target = $region12
      $region11: #{_topk5_impl.1} parent=5 // pred_region
        %s101 = ssub.s32 %s9, 1
      $region12: #{_topk5_impl.1} parent=5 // pred_fallthru
        _
      %p102 = scmp.lt.s32.totalorder %s9, 2
      // Predicated region
      $region13: #{_topk5_impl.1} parent=5 // pred_check
        %p103 = pneg %p102
      $region14: #{_topk5_impl.1} parent=5 // pred_check_branch
        %105 = sbr.rel (%p103) target = $region16
      $region15: #{_topk5_impl.1} parent=5 // pred_region
        // Predicated region
        $region17: #{_topk5_impl.1} parent=15 // pred_check
          %p106 = pneg %p29
        $region18: #{_topk5_impl.1} parent=15 // pred_check_branch
          %108 = sbr.rel (%p106) target = $region20
        $region19: #{_topk5_impl.1} parent=15 // pred_region
          %s109 = sand.u32 %s19, 1
          %s110 = sand.u32 %s19, 1
          %s111 = smul.addr %s110, 128
          %s112 = scalar_lea.vmem [#allocation2], %s111
          %s113 = smul.u32 4, %s9
          %s114 = smul.addr %s113, 8
          %s115 = scalar_lea.vmem %s0, %s114
          // Predicated region
          $region21: #{_topk5_impl.1} parent=19 // pred_check
            _
          $region22: #{_topk5_impl.1} parent=19 // pred_check_branch
            %117 = sbr.rel (0) target = $region24
          $region23: #{_topk5_impl.1} parent=19 // pred_region
            // Predicated region
            $region25: #{_topk5_impl.1} parent=23 // pred_check
              _
            $region26: #{_topk5_impl.1} parent=23 // pred_check_branch
              %119 = sbr.rel (0) target = $region28
            $region27: #{_topk5_impl.1} parent=23 // pred_region
              loop: start=0, step=1, limit=1
              $region29: #{_topk5_impl.1} parent=27 // loop_pre_header
                _
              $region30: #{_topk5_impl.1} parent=27 // loop_header
                %s121 = sphi 0, %s125
                %p122 = scmp.ge.s32.totalorder %s121, 1
                %s126 = sphi %s115, %s115
                %s127 = sphi %s112, %s112
              $region31: #{_topk5_impl.1} parent=27 // loop_header_branch
                %124 = sbr.rel (%p122) target = $region35
              $region32: #{_topk5_impl.1} parent=27 // loop_body
                %v128 = vld [vmem:[%s126] sm:$0xff]
                %129 = vst [vmem:[%s127] sm:$0xff] %v128
                %v130 = vld [vmem:[%s126 + $0x8] sm:$0xff]
                %131 = vst [vmem:[%s127 + $0x8] sm:$0xff] %v130
                %v132 = vld [vmem:[%s126 + $0x10] sm:$0xff]
                %133 = vst [vmem:[%s127 + $0x10] sm:$0xff] %v132
                %v134 = vld [vmem:[%s126 + $0x18] sm:$0xff]
                %135 = vst [vmem:[%s127 + $0x18] sm:$0xff] %v134
                %v136 = vld [vmem:[%s126 + $0x40] sm:$0xff]
                %137 = vst [vmem:[%s127 + $0x20] sm:$0xff] %v136
                %v138 = vld [vmem:[%s126 + $0x48] sm:$0xff]
                %139 = vst [vmem:[%s127 + $0x28] sm:$0xff] %v138
                %v140 = vld [vmem:[%s126 + $0x50] sm:$0xff]
                %141 = vst [vmem:[%s127 + $0x30] sm:$0xff] %v140
                %v142 = vld [vmem:[%s126 + $0x58] sm:$0xff]
                %143 = vst [vmem:[%s127 + $0x38] sm:$0xff] %v142
                %v144 = vld [vmem:[%s126 + $0x80] sm:$0xff]
                %145 = vst [vmem:[%s127 + $0x40] sm:$0xff] %v144
                %v146 = vld [vmem:[%s126 + $0x88] sm:$0xff]
                %147 = vst [vmem:[%s127 + $0x48] sm:$0xff] %v146
                %v148 = vld [vmem:[%s126 + $0x90] sm:$0xff]
                %149 = vst [vmem:[%s127 + $0x50] sm:$0xff] %v148
                %v150 = vld [vmem:[%s126 + $0x98] sm:$0xff]
                %151 = vst [vmem:[%s127 + $0x58] sm:$0xff] %v150
                %v152 = vld [vmem:[%s126 + $0xc0] sm:$0xff]
                %153 = vst [vmem:[%s127 + $0x60] sm:$0xff] %v152
                %v154 = vld [vmem:[%s126 + $0xc8] sm:$0xff]
                %155 = vst [vmem:[%s127 + $0x68] sm:$0xff] %v154
                %v156 = vld [vmem:[%s126 + $0xd0] sm:$0xff]
                %157 = vst [vmem:[%s127 + $0x70] sm:$0xff] %v156
                %v158 = vld [vmem:[%s126 + $0xd8] sm:$0xff]
                %159 = vst [vmem:[%s127 + $0x78] sm:$0xff] %v158
              $region33: #{_topk5_impl.1} parent=27 // loop_footer
                %s125 = sadd.s32 1, %s121
              $region34: #{_topk5_impl.1} parent=27 // loop_footer_branch
                %120 = sbr.rel target = $region30
              $region35: #{_topk5_impl.1} parent=27 // loop_exit
                _
            $region28: #{_topk5_impl.1} parent=23 // pred_fallthru
              _
            // Predicated region
            $region36: #{_topk5_impl.1} parent=23 // pred_check
              _
            $region37: #{_topk5_impl.1} parent=23 // pred_check_branch
              %161 = sbr.rel target = $region39
            $region38: #{_topk5_impl.1} parent=23 // pred_region
              _
            $region39: #{_topk5_impl.1} parent=23 // pred_fallthru
              _
          $region24: #{_topk5_impl.1} parent=19 // pred_fallthru
            _
          %162 = vnop
        $region20: #{_topk5_impl.1} parent=15 // pred_fallthru
          _
      $region16: #{_topk5_impl.1} parent=5 // pred_fallthru
        _
      %p163 = scmp.le.s32.totalorder 1, %s9
      %p164 = scmp.lt.s32.totalorder %s9, 3
      %p165 = pnand %p163, %p164
      %p166 = pneg %p165
      // Predicated region
      $region40: #{_topk5_impl.1} parent=5 // pred_check
        _
      $region41: #{_topk5_impl.1} parent=5 // pred_check_branch
        %168 = sbr.rel (%p165) target = $region43
      $region42: #{_topk5_impl.1} parent=5 // pred_region
        %s169 = ssub.s32 %s9, 1
        %s170 = sand.u32 %s22, 1
        %s171 = sand.u32 %s22, 1
        %s172 = smul.addr %s171, 128
        %s173 = scalar_lea.vmem [#allocation2], %s172
        // Predicated region
        $region44: #{_topk5_impl.1} parent=42 // pred_check
          %p174 = pneg %p35
        $region45: #{_topk5_impl.1} parent=42 // pred_check_branch
          %176 = sbr.rel (%p174) target = $region47
        $region46: #{_topk5_impl.1} parent=42 // pred_region
          _
        $region47: #{_topk5_impl.1} parent=42 // pred_fallthru
          _
        %s177 = sand.u32 %s22, 1
        %s178 = sand.u32 %s22, 1
        %s179 = smul.addr %s178, 128
        %s180 = scalar_lea.vmem [#allocation2], %s179
        %p181 = pneg %p35
        %p182 = pneg %p32
        %p183 = pneg %p61
        %p184 = pneg %p58
        %s185 = smul.u32 4, %s14
        %p186 = scmp.lt.s32.totalorder %s185, 7
        %s187 = scalar_select %p186, %s185, 7
        %s188 = smul.addr %s187, 8
        %s189 = scalar_lea.vmem %s1, %s188
        %p190 = pneg %p87
        %p191 = pneg %p84
        %s192 = smul.u32 4, %s14
        %p193 = scmp.lt.s32.totalorder %s192, 7
        %s194 = scalar_select %p193, %s192, 7
        %s195 = smul.addr %s194, 8
        %s196 = scalar_lea.vmem %s2, %s195
        %s197 = smul.u32 4, %s14
        %s198 = smul.u32 4, %s14
        %p199 = scmp.lt.s32.totalorder %s198, 7
        %s200 = scalar_select %p199, %s198, 7
        %s201 = smul.addr %s200, 8
        %s202 = scalar_lea.vmem %s1, %s201
        %s203 = smul.u32 4, %s14
        %s204 = smul.u32 4, %s14
        %p205 = scmp.lt.s32.totalorder %s204, 7
        %s206 = scalar_select %p205, %s204, 7
        %s207 = smul.addr %s206, 8
        %s208 = scalar_lea.vmem %s2, %s207
        %s209 = smul.u32 4, %s14
        %v210 = vld [vmem:[%s173] sm:$0xff]
        %v211 = vld [vmem:[%s173 + $0x8] sm:$0xff]
        %v212 = vld [vmem:[%s173 + $0x10] sm:$0xff]
        %v213 = vld [vmem:[%s173 + $0x18] sm:$0xff]
        %v214 = vld [vmem:[%s173 + $0x20] sm:$0xff]
        %v215 = vld [vmem:[%s173 + $0x28] sm:$0xff]
        %v216 = vld [vmem:[%s173 + $0x30] sm:$0xff]
        %v217 = vld [vmem:[%s173 + $0x38] sm:$0xff]
        %v218 = vld [vmem:[%s173 + $0x40] sm:$0xff]
        %v219 = vld [vmem:[%s173 + $0x48] sm:$0xff]
        %v220 = vld [vmem:[%s173 + $0x50] sm:$0xff]
        %v221 = vld [vmem:[%s173 + $0x58] sm:$0xff]
        %v222 = vld [vmem:[%s173 + $0x60] sm:$0xff]
        %v223 = vld [vmem:[%s173 + $0x68] sm:$0xff]
        %v224 = vld [vmem:[%s173 + $0x70] sm:$0xff]
        %v225 = vld [vmem:[%s173 + $0x78] sm:$0xff]
        %v226 = vlaneseq
        %v227 = vshrl.u32 %v226, 7
        %v228 = vadd.s32 %v227, 8
        %v229 = vadd.s32 %v227, 16
        %v230 = vadd.s32 %v227, 24
        %231 = vst [vmem:[%s202] sm:$0xe0] 0.0
        %232 = vst [vmem:[%s202 + $0x8] sm:$0xe0] 0.0
        %233 = vst [vmem:[%s202 + $0x10] sm:$0xe0] 0.0
        %234 = vst [vmem:[%s202 + $0x18] sm:$0xe0] 0.0
        %235 = vst [vmem:[%s208] sm:$0xe0] 0
        %236 = vst [vmem:[%s208 + $0x8] sm:$0xe0] 0
        %237 = vst [vmem:[%s208 + $0x10] sm:$0xe0] 0
        %238 = vst [vmem:[%s208 + $0x18] sm:$0xe0] 0
        %v239 = vmax.f32 %v210, %v214
        %v240 = vmax.f32 %v239, %v218
        %v241 = vmax.f32 %v240, %v222
        %v242 = vrot.slane %v241, 4
        %v243 = vmax.f32 %v241, %v242
        %v244 = vrot.slane %v243, 2
        %v245 = vmax.f32 %v243, %v244
        %v246 = vrot.slane %v245, 1
        %v247 = vmax.f32 %v245, %v246
        %v248 = vmax.f32 %v211, %v215
        %v249 = vmax.f32 %v248, %v219
        %v250 = vmax.f32 %v249, %v223
        %v251 = vrot.slane %v250, 4
        %v252 = vmax.f32 %v250, %v251
        %v253 = vrot.slane %v252, 2
        %v254 = vmax.f32 %v252, %v253
        %v255 = vrot.slane %v254, 1
        %v256 = vmax.f32 %v254, %v255
        %v257 = vmax.f32 %v212, %v216
        %v258 = vmax.f32 %v257, %v220
        %v259 = vmax.f32 %v258, %v224
        %v260 = vrot.slane %v259, 4
        %v261 = vmax.f32 %v259, %v260
        %v262 = vrot.slane %v261, 2
        %v263 = vmax.f32 %v261, %v262
        %v264 = vrot.slane %v263, 1
        %v265 = vmax.f32 %v263, %v264
        %v266 = vmax.f32 %v213, %v217
        %v267 = vmax.f32 %v266, %v221
        %v268 = vmax.f32 %v267, %v225
        %v269 = vrot.slane %v268, 4
        %v270 = vmax.f32 %v268, %v269
        %v271 = vrot.slane %v270, 2
        %v272 = vmax.f32 %v270, %v271
        %v273 = vrot.slane %v272, 1
        %v274 = vmax.f32 %v272, %v273
        %vm275 = vcmp.eq.f32.partialorder %v210, %v247
        %vm276 = vcmp.eq.f32.partialorder %v211, %v256
        %vm277 = vcmp.eq.f32.partialorder %v212, %v265
        %vm278 = vcmp.eq.f32.partialorder %v213, %v274
        %vm279 = vcmp.eq.f32.partialorder %v214, %v247
        %vm280 = vcmp.eq.f32.partialorder %v215, %v256
        %vm281 = vcmp.eq.f32.partialorder %v216, %v265
        %vm282 = vcmp.eq.f32.partialorder %v217, %v274
        %vm283 = vcmp.eq.f32.partialorder %v218, %v247
        %vm284 = vcmp.eq.f32.partialorder %v219, %v256
        %vm285 = vcmp.eq.f32.partialorder %v220, %v265
        %vm286 = vcmp.eq.f32.partialorder %v221, %v274
        %vm287 = vcmp.eq.f32.partialorder %v222, %v247
        %vm288 = vcmp.eq.f32.partialorder %v223, %v256
        %vm289 = vcmp.eq.f32.partialorder %v224, %v265
        %vm290 = vcmp.eq.f32.partialorder %v225, %v274
        %v291 = vsel %vm275, %v227, 32
        %v292 = vsel %vm276, %v227, 32
        %v293 = vsel %vm277, %v227, 32
        %v294 = vsel %vm278, %v227, 32
        %v295 = vsel %vm279, %v228, 32
        %v296 = vsel %vm280, %v228, 32
        %v297 = vsel %vm281, %v228, 32
        %v298 = vsel %vm282, %v228, 32
        %v299 = vsel %vm283, %v229, 32
        %v300 = vsel %vm284, %v229, 32
        %v301 = vsel %vm285, %v229, 32
        %v302 = vsel %vm286, %v229, 32
        %v303 = vsel %vm287, %v230, 32
        %v304 = vsel %vm288, %v230, 32
        %v305 = vsel %vm289, %v230, 32
        %v306 = vsel %vm290, %v230, 32
        %vm307 = vcmp.lt.s32.totalorder %v291, %v295
        %v308 = vsel %vm307, %v291, %v295
        %vm309 = vcmp.lt.s32.totalorder %v308, %v299
        %v310 = vsel %vm309, %v308, %v299
        %vm311 = vcmp.lt.s32.totalorder %v310, %v303
        %v312 = vsel %vm311, %v310, %v303
        %v313 = vrot.slane %v312, 4
        %vm314 = vcmp.lt.s32.totalorder %v312, %v313
        %v315 = vsel %vm314, %v312, %v313
        %v316 = vrot.slane %v315, 2
        %vm317 = vcmp.lt.s32.totalorder %v315, %v316
        %v318 = vsel %vm317, %v315, %v316
        %v319 = vrot.slane %v318, 1
        %vm320 = vcmp.lt.s32.totalorder %v318, %v319
        %v321 = vsel %vm320, %v318, %v319
        %vm322 = vcmp.lt.s32.totalorder %v292, %v296
        %v323 = vsel %vm322, %v292, %v296
        %vm324 = vcmp.lt.s32.totalorder %v323, %v300
        %v325 = vsel %vm324, %v323, %v300
        %vm326 = vcmp.lt.s32.totalorder %v325, %v304
        %v327 = vsel %vm326, %v325, %v304
        %v328 = vrot.slane %v327, 4
        %vm329 = vcmp.lt.s32.totalorder %v327, %v328
        %v330 = vsel %vm329, %v327, %v328
        %v331 = vrot.slane %v330, 2
        %vm332 = vcmp.lt.s32.totalorder %v330, %v331
        %v333 = vsel %vm332, %v330, %v331
        %v334 = vrot.slane %v333, 1
        %vm335 = vcmp.lt.s32.totalorder %v333, %v334
        %v336 = vsel %vm335, %v333, %v334
        %vm337 = vcmp.lt.s32.totalorder %v293, %v297
        %v338 = vsel %vm337, %v293, %v297
        %vm339 = vcmp.lt.s32.totalorder %v338, %v301
        %v340 = vsel %vm339, %v338, %v301
        %vm341 = vcmp.lt.s32.totalorder %v340, %v305
        %v342 = vsel %vm341, %v340, %v305
        %v343 = vrot.slane %v342, 4
        %vm344 = vcmp.lt.s32.totalorder %v342, %v343
        %v345 = vsel %vm344, %v342, %v343
        %v346 = vrot.slane %v345, 2
        %vm347 = vcmp.lt.s32.totalorder %v345, %v346
        %v348 = vsel %vm347, %v345, %v346
        %v349 = vrot.slane %v348, 1
        %vm350 = vcmp.lt.s32.totalorder %v348, %v349
        %v351 = vsel %vm350, %v348, %v349
        %vm352 = vcmp.lt.s32.totalorder %v294, %v298
        %v353 = vsel %vm352, %v294, %v298
        %vm354 = vcmp.lt.s32.totalorder %v353, %v302
        %v355 = vsel %vm354, %v353, %v302
        %vm356 = vcmp.lt.s32.totalorder %v355, %v306
        %v357 = vsel %vm356, %v355, %v306
        %v358 = vrot.slane %v357, 4
        %vm359 = vcmp.lt.s32.totalorder %v357, %v358
        %v360 = vsel %vm359, %v357, %v358
        %v361 = vrot.slane %v360, 2
        %vm362 = vcmp.lt.s32.totalorder %v360, %v361
        %v363 = vsel %vm362, %v360, %v361
        %v364 = vrot.slane %v363, 1
        %vm365 = vcmp.lt.s32.totalorder %v363, %v364
        %v366 = vsel %vm365, %v363, %v364
        %vm367 = vcmp.lt.s32.totalorder %v321, 28
        %v368 = vsel %vm367, %v321, 28
        %vm369 = vcmp.lt.s32.totalorder %v336, 28
        %v370 = vsel %vm369, %v336, 28
        %vm371 = vcmp.lt.s32.totalorder %v351, 28
        %v372 = vsel %vm371, %v351, 28
        %vm373 = vcmp.lt.s32.totalorder %v366, 28
        %v374 = vsel %vm373, %v366, 28
        %v379 = vcombine.low %v247, %v256
        %v380 = vcombine.low %v265, %v274
        %v382 = vunpack.c.l.s4 1966171168
        %v383 = vunpack.c.0.s8 %v382
        %v384 = vlaneseq
        %v385 = vshrl.u32 %v384, 7
        %v386 = vsub.s32 %v383, %v385
        %v387 = vrot.slane %v379, %v386
        %v389 = vunpack.c.l.s4 1966171168
        %v390 = vunpack.c.0.s8 %v389
        %v391 = vlaneseq
        %v392 = vshrl.u32 %v391, 7
        %v393 = vsub.s32 %v390, %v392
        %v394 = vrot.slane %v380, %v393
        %v395 = vcombine.low %v387, %v394
        %v397 = vunpack.c.l.s4 1966171168
        %v398 = vunpack.c.0.s8 %v397
        %v399 = vlaneseq
        %v400 = vshrl.u32 %v399, 7
        %v401 = vsub.s32 %v398, %v400
        %v402 = vrot.slane %v395, %v401
        %v404 = vlaneseq
        %vm405 = vcmp.ge.s32.totalorder %v404, 0
        %vm406 = vcmp.lt.s32.totalorder %v404, 512
        %vm407 = vmand %vm405, %vm406
        %408 = vst.msk [vmem:[%s202] ss:$8 sm:$0xf] %vm407, %v402
        %409 = vst.msk [vmem:[%s202] ss:$8 sm:$0x0] %vm407, %v402
        %v410 = vcombine.low %v368, %v370
        %v411 = vcombine.low %v372, %v374
        %v413 = vunpack.c.l.s4 1966171168
        %v414 = vunpack.c.0.s8 %v413
        %v415 = vlaneseq
        %v416 = vshrl.u32 %v415, 7
        %v417 = vsub.s32 %v414, %v416
        %v418 = vrot.slane %v410, %v417
        %v420 = vunpack.c.l.s4 1966171168
        %v421 = vunpack.c.0.s8 %v420
        %v422 = vlaneseq
        %v423 = vshrl.u32 %v422, 7
        %v424 = vsub.s32 %v421, %v423
        %v425 = vrot.slane %v411, %v424
        %v426 = vcombine.low %v418, %v425
        %v428 = vunpack.c.l.s4 1966171168
        %v429 = vunpack.c.0.s8 %v428
        %v430 = vlaneseq
        %v431 = vshrl.u32 %v430, 7
        %v432 = vsub.s32 %v429, %v431
        %v433 = vrot.slane %v426, %v432
        %434 = vst.msk [vmem:[%s208] ss:$8 sm:$0xf] %vm407, %v433
        %435 = vst.msk [vmem:[%s208] ss:$8 sm:$0x0] %vm407, %v433
        %vm436 = vcmp.eq.s32.totalorder %v227, %v368
        %vm437 = vcmp.eq.s32.totalorder %v227, %v370
        %vm438 = vcmp.eq.s32.totalorder %v227, %v372
        %vm439 = vcmp.eq.s32.totalorder %v227, %v374
        %vm440 = vcmp.eq.s32.totalorder %v228, %v368
        %vm441 = vcmp.eq.s32.totalorder %v228, %v370
        %vm442 = vcmp.eq.s32.totalorder %v228, %v372
        %vm443 = vcmp.eq.s32.totalorder %v228, %v374
        %vm444 = vcmp.eq.s32.totalorder %v229, %v368
        %vm445 = vcmp.eq.s32.totalorder %v229, %v370
        %vm446 = vcmp.eq.s32.totalorder %v229, %v372
        %vm447 = vcmp.eq.s32.totalorder %v229, %v374
        %vm448 = vcmp.eq.s32.totalorder %v230, %v368
        %vm449 = vcmp.eq.s32.totalorder %v230, %v370
        %vm450 = vcmp.eq.s32.totalorder %v230, %v372
        %vm451 = vcmp.eq.s32.totalorder %v230, %v374
        %v452 = vsel %vm436, -inf, %v210
        %v453 = vsel %vm437, -inf, %v211
        %v454 = vsel %vm438, -inf, %v212
        %v455 = vsel %vm439, -inf, %v213
        %v456 = vsel %vm440, -inf, %v214
        %v457 = vsel %vm441, -inf, %v215
        %v458 = vsel %vm442, -inf, %v216
        %v459 = vsel %vm443, -inf, %v217
        %v460 = vsel %vm444, -inf, %v218
        %v461 = vsel %vm445, -inf, %v219
        %v462 = vsel %vm446, -inf, %v220
        %v463 = vsel %vm447, -inf, %v221
        %v464 = vsel %vm448, -inf, %v222
        %v465 = vsel %vm449, -inf, %v223
        %v466 = vsel %vm450, -inf, %v224
        %v467 = vsel %vm451, -inf, %v225
        %v468 = vmax.f32 %v452, %v456
        %v469 = vmax.f32 %v468, %v460
        %v470 = vmax.f32 %v469, %v464
        %v471 = vrot.slane %v470, 4
        %v472 = vmax.f32 %v470, %v471
        %v473 = vrot.slane %v472, 2
        %v474 = vmax.f32 %v472, %v473
        %v475 = vrot.slane %v474, 1
        %v476 = vmax.f32 %v474, %v475
        %v477 = vmax.f32 %v453, %v457
        %v478 = vmax.f32 %v477, %v461
        %v479 = vmax.f32 %v478, %v465
        %v480 = vrot.slane %v479, 4
        %v481 = vmax.f32 %v479, %v480
        %v482 = vrot.slane %v481, 2
        %v483 = vmax.f32 %v481, %v482
        %v484 = vrot.slane %v483, 1
        %v485 = vmax.f32 %v483, %v484
        %v486 = vmax.f32 %v454, %v458
        %v487 = vmax.f32 %v486, %v462
        %v488 = vmax.f32 %v487, %v466
        %v489 = vrot.slane %v488, 4
        %v490 = vmax.f32 %v488, %v489
        %v491 = vrot.slane %v490, 2
        %v492 = vmax.f32 %v490, %v491
        %v493 = vrot.slane %v492, 1
        %v494 = vmax.f32 %v492, %v493
        %v495 = vmax.f32 %v455, %v459
        %v496 = vmax.f32 %v495, %v463
        %v497 = vmax.f32 %v496, %v467
        %v498 = vrot.slane %v497, 4
        %v499 = vmax.f32 %v497, %v498
        %v500 = vrot.slane %v499, 2
        %v501 = vmax.f32 %v499, %v500
        %v502 = vrot.slane %v501, 1
        %v503 = vmax.f32 %v501, %v502
        %vm504 = vcmp.eq.f32.partialorder %v452, %v476
        %vm505 = vcmp.eq.f32.partialorder %v453, %v485
        %vm506 = vcmp.eq.f32.partialorder %v454, %v494
        %vm507 = vcmp.eq.f32.partialorder %v455, %v503
        %vm508 = vcmp.eq.f32.partialorder %v456, %v476
        %vm509 = vcmp.eq.f32.partialorder %v457, %v485
        %vm510 = vcmp.eq.f32.partialorder %v458, %v494
        %vm511 = vcmp.eq.f32.partialorder %v459, %v503
        %vm512 = vcmp.eq.f32.partialorder %v460, %v476
        %vm513 = vcmp.eq.f32.partialorder %v461, %v485
        %vm514 = vcmp.eq.f32.partialorder %v462, %v494
        %vm515 = vcmp.eq.f32.partialorder %v463, %v503
        %vm516 = vcmp.eq.f32.partialorder %v464, %v476
        %vm517 = vcmp.eq.f32.partialorder %v465, %v485
        %vm518 = vcmp.eq.f32.partialorder %v466, %v494
        %vm519 = vcmp.eq.f32.partialorder %v467, %v503
        %v520 = vsel %vm504, %v227, 32
        %v521 = vsel %vm505, %v227, 32
        %v522 = vsel %vm506, %v227, 32
        %v523 = vsel %vm507, %v227, 32
        %v524 = vsel %vm508, %v228, 32
        %v525 = vsel %vm509, %v228, 32
        %v526 = vsel %vm510, %v228, 32
        %v527 = vsel %vm511, %v228, 32
        %v528 = vsel %vm512, %v229, 32
        %v529 = vsel %vm513, %v229, 32
        %v530 = vsel %vm514, %v229, 32
        %v531 = vsel %vm515, %v229, 32
        %v532 = vsel %vm516, %v230, 32
        %v533 = vsel %vm517, %v230, 32
        %v534 = vsel %vm518, %v230, 32
        %v535 = vsel %vm519, %v230, 32
        %vm536 = vcmp.lt.s32.totalorder %v520, %v524
        %v537 = vsel %vm536, %v520, %v524
        %vm538 = vcmp.lt.s32.totalorder %v537, %v528
        %v539 = vsel %vm538, %v537, %v528
        %vm540 = vcmp.lt.s32.totalorder %v539, %v532
        %v541 = vsel %vm540, %v539, %v532
        %v542 = vrot.slane %v541, 4
        %vm543 = vcmp.lt.s32.totalorder %v541, %v542
        %v544 = vsel %vm543, %v541, %v542
        %v545 = vrot.slane %v544, 2
        %vm546 = vcmp.lt.s32.totalorder %v544, %v545
        %v547 = vsel %vm546, %v544, %v545
        %v548 = vrot.slane %v547, 1
        %vm549 = vcmp.lt.s32.totalorder %v547, %v548
        %v550 = vsel %vm549, %v547, %v548
        %vm551 = vcmp.lt.s32.totalorder %v521, %v525
        %v552 = vsel %vm551, %v521, %v525
        %vm553 = vcmp.lt.s32.totalorder %v552, %v529
        %v554 = vsel %vm553, %v552, %v529
        %vm555 = vcmp.lt.s32.totalorder %v554, %v533
        %v556 = vsel %vm555, %v554, %v533
        %v557 = vrot.slane %v556, 4
        %vm558 = vcmp.lt.s32.totalorder %v556, %v557
        %v559 = vsel %vm558, %v556, %v557
        %v560 = vrot.slane %v559, 2
        %vm561 = vcmp.lt.s32.totalorder %v559, %v560
        %v562 = vsel %vm561, %v559, %v560
        %v563 = vrot.slane %v562, 1
        %vm564 = vcmp.lt.s32.totalorder %v562, %v563
        %v565 = vsel %vm564, %v562, %v563
        %vm566 = vcmp.lt.s32.totalorder %v522, %v526
        %v567 = vsel %vm566, %v522, %v526
        %vm568 = vcmp.lt.s32.totalorder %v567, %v530
        %v569 = vsel %vm568, %v567, %v530
        %vm570 = vcmp.lt.s32.totalorder %v569, %v534
        %v571 = vsel %vm570, %v569, %v534
        %v572 = vrot.slane %v571, 4
        %vm573 = vcmp.lt.s32.totalorder %v571, %v572
        %v574 = vsel %vm573, %v571, %v572
        %v575 = vrot.slane %v574, 2
        %vm576 = vcmp.lt.s32.totalorder %v574, %v575
        %v577 = vsel %vm576, %v574, %v575
        %v578 = vrot.slane %v577, 1
        %vm579 = vcmp.lt.s32.totalorder %v577, %v578
        %v580 = vsel %vm579, %v577, %v578
        %vm581 = vcmp.lt.s32.totalorder %v523, %v527
        %v582 = vsel %vm581, %v523, %v527
        %vm583 = vcmp.lt.s32.totalorder %v582, %v531
        %v584 = vsel %vm583, %v582, %v531
        %vm585 = vcmp.lt.s32.totalorder %v584, %v535
        %v586 = vsel %vm585, %v584, %v535
        %v587 = vrot.slane %v586, 4
        %vm588 = vcmp.lt.s32.totalorder %v586, %v587
        %v589 = vsel %vm588, %v586, %v587
        %v590 = vrot.slane %v589, 2
        %vm591 = vcmp.lt.s32.totalorder %v589, %v590
        %v592 = vsel %vm591, %v589, %v590
        %v593 = vrot.slane %v592, 1
        %vm594 = vcmp.lt.s32.totalorder %v592, %v593
        %v595 = vsel %vm594, %v592, %v593
        %vm596 = vcmp.lt.s32.totalorder %v550, 28
        %v597 = vsel %vm596, %v550, 28
        %vm598 = vcmp.lt.s32.totalorder %v565, 28
        %v599 = vsel %vm598, %v565, 28
        %vm600 = vcmp.lt.s32.totalorder %v580, 28
        %v601 = vsel %vm600, %v580, 28
        %vm602 = vcmp.lt.s32.totalorder %v595, 28
        %v603 = vsel %vm602, %v595, 28
        %v608 = vcombine.low %v476, %v485
        %v609 = vcombine.low %v494, %v503
        %v611 = vunpack.c.l.s4 1966171168
        %v612 = vunpack.c.0.s8 %v611
        %v613 = vlaneseq
        %v614 = vshrl.u32 %v613, 7
        %v615 = vsub.s32 %v612, %v614
        %v616 = vrot.slane %v608, %v615
        %v618 = vunpack.c.l.s4 1966171168
        %v619 = vunpack.c.0.s8 %v618
        %v620 = vlaneseq
        %v621 = vshrl.u32 %v620, 7
        %v622 = vsub.s32 %v619, %v621
        %v623 = vrot.slane %v609, %v622
        %v624 = vcombine.low %v616, %v623
        %v626 = vunpack.c.l.s4 1966171168
        %v627 = vunpack.c.0.s8 %v626
        %v628 = vlaneseq
        %v629 = vshrl.u32 %v628, 7
        %v630 = vsub.s32 %v627, %v629
        %v631 = vrot.slane %v624, %v630
        %s633 = scalar_lea.vmem %s202, 1
        %634 = vst.msk [vmem:[%s633] ss:$8 sm:$0xf] %vm407, %v631
        %635 = vst.msk [vmem:[%s633] ss:$8 sm:$0x0] %vm407, %v631
        %v636 = vcombine.low %v597, %v599
        %v637 = vcombine.low %v601, %v603
        %v639 = vunpack.c.l.s4 1966171168
        %v640 = vunpack.c.0.s8 %v639
        %v641 = vlaneseq
        %v642 = vshrl.u32 %v641, 7
        %v643 = vsub.s32 %v640, %v642
        %v644 = vrot.slane %v636, %v643
        %v646 = vunpack.c.l.s4 1966171168
        %v647 = vunpack.c.0.s8 %v646
        %v648 = vlaneseq
        %v649 = vshrl.u32 %v648, 7
        %v650 = vsub.s32 %v647, %v649
        %v651 = vrot.slane %v637, %v650
        %v652 = vcombine.low %v644, %v651
        %v654 = vunpack.c.l.s4 1966171168
        %v655 = vunpack.c.0.s8 %v654
        %v656 = vlaneseq
        %v657 = vshrl.u32 %v656, 7
        %v658 = vsub.s32 %v655, %v657
        %v659 = vrot.slane %v652, %v658
        %s660 = scalar_lea.vmem %s208, 1
        %661 = vst.msk [vmem:[%s660] ss:$8 sm:$0xf] %vm407, %v659
        %662 = vst.msk [vmem:[%s660] ss:$8 sm:$0x0] %vm407, %v659
        %vm663 = vcmp.eq.s32.totalorder %v227, %v597
        %vm664 = vcmp.eq.s32.totalorder %v227, %v599
        %vm665 = vcmp.eq.s32.totalorder %v227, %v601
        %vm666 = vcmp.eq.s32.totalorder %v227, %v603
        %vm667 = vcmp.eq.s32.totalorder %v228, %v597
        %vm668 = vcmp.eq.s32.totalorder %v228, %v599
        %vm669 = vcmp.eq.s32.totalorder %v228, %v601
        %vm670 = vcmp.eq.s32.totalorder %v228, %v603
        %vm671 = vcmp.eq.s32.totalorder %v229, %v597
        %vm672 = vcmp.eq.s32.totalorder %v229, %v599
        %vm673 = vcmp.eq.s32.totalorder %v229, %v601
        %vm674 = vcmp.eq.s32.totalorder %v229, %v603
        %vm675 = vcmp.eq.s32.totalorder %v230, %v597
        %vm676 = vcmp.eq.s32.totalorder %v230, %v599
        %vm677 = vcmp.eq.s32.totalorder %v230, %v601
        %vm678 = vcmp.eq.s32.totalorder %v230, %v603
        %v679 = vsel %vm663, -inf, %v452
        %v680 = vsel %vm664, -inf, %v453
        %v681 = vsel %vm665, -inf, %v454
        %v682 = vsel %vm666, -inf, %v455
        %v683 = vsel %vm667, -inf, %v456
        %v684 = vsel %vm668, -inf, %v457
        %v685 = vsel %vm669, -inf, %v458
        %v686 = vsel %vm670, -inf, %v459
        %v687 = vsel %vm671, -inf, %v460
        %v688 = vsel %vm672, -inf, %v461
        %v689 = vsel %vm673, -inf, %v462
        %v690 = vsel %vm674, -inf, %v463
        %v691 = vsel %vm675, -inf, %v464
        %v692 = vsel %vm676, -inf, %v465
        %v693 = vsel %vm677, -inf, %v466
        %v694 = vsel %vm678, -inf, %v467
        %v695 = vmax.f32 %v679, %v683
        %v696 = vmax.f32 %v695, %v687
        %v697 = vmax.f32 %v696, %v691
        %v698 = vrot.slane %v697, 4
        %v699 = vmax.f32 %v697, %v698
        %v700 = vrot.slane %v699, 2
        %v701 = vmax.f32 %v699, %v700
        %v702 = vrot.slane %v701, 1
        %v703 = vmax.f32 %v701, %v702
        %v704 = vmax.f32 %v680, %v684
        %v705 = vmax.f32 %v704, %v688
        %v706 = vmax.f32 %v705, %v692
        %v707 = vrot.slane %v706, 4
        %v708 = vmax.f32 %v706, %v707
        %v709 = vrot.slane %v708, 2
        %v710 = vmax.f32 %v708, %v709
        %v711 = vrot.slane %v710, 1
        %v712 = vmax.f32 %v710, %v711
        %v713 = vmax.f32 %v681, %v685
        %v714 = vmax.f32 %v713, %v689
        %v715 = vmax.f32 %v714, %v693
        %v716 = vrot.slane %v715, 4
        %v717 = vmax.f32 %v715, %v716
        %v718 = vrot.slane %v717, 2
        %v719 = vmax.f32 %v717, %v718
        %v720 = vrot.slane %v719, 1
        %v721 = vmax.f32 %v719, %v720
        %v722 = vmax.f32 %v682, %v686
        %v723 = vmax.f32 %v722, %v690
        %v724 = vmax.f32 %v723, %v694
        %v725 = vrot.slane %v724, 4
        %v726 = vmax.f32 %v724, %v725
        %v727 = vrot.slane %v726, 2
        %v728 = vmax.f32 %v726, %v727
        %v729 = vrot.slane %v728, 1
        %v730 = vmax.f32 %v728, %v729
        %vm731 = vcmp.eq.f32.partialorder %v679, %v703
        %vm732 = vcmp.eq.f32.partialorder %v680, %v712
        %vm733 = vcmp.eq.f32.partialorder %v681, %v721
        %vm734 = vcmp.eq.f32.partialorder %v682, %v730
        %vm735 = vcmp.eq.f32.partialorder %v683, %v703
        %vm736 = vcmp.eq.f32.partialorder %v684, %v712
        %vm737 = vcmp.eq.f32.partialorder %v685, %v721
        %vm738 = vcmp.eq.f32.partialorder %v686, %v730
        %vm739 = vcmp.eq.f32.partialorder %v687, %v703
        %vm740 = vcmp.eq.f32.partialorder %v688, %v712
        %vm741 = vcmp.eq.f32.partialorder %v689, %v721
        %vm742 = vcmp.eq.f32.partialorder %v690, %v730
        %vm743 = vcmp.eq.f32.partialorder %v691, %v703
        %vm744 = vcmp.eq.f32.partialorder %v692, %v712
        %vm745 = vcmp.eq.f32.partialorder %v693, %v721
        %vm746 = vcmp.eq.f32.partialorder %v694, %v730
        %v747 = vsel %vm731, %v227, 32
        %v748 = vsel %vm732, %v227, 32
        %v749 = vsel %vm733, %v227, 32
        %v750 = vsel %vm734, %v227, 32
        %v751 = vsel %vm735, %v228, 32
        %v752 = vsel %vm736, %v228, 32
        %v753 = vsel %vm737, %v228, 32
        %v754 = vsel %vm738, %v228, 32
        %v755 = vsel %vm739, %v229, 32
        %v756 = vsel %vm740, %v229, 32
        %v757 = vsel %vm741, %v229, 32
        %v758 = vsel %vm742, %v229, 32
        %v759 = vsel %vm743, %v230, 32
        %v760 = vsel %vm744, %v230, 32
        %v761 = vsel %vm745, %v230, 32
        %v762 = vsel %vm746, %v230, 32
        %vm763 = vcmp.lt.s32.totalorder %v747, %v751
        %v764 = vsel %vm763, %v747, %v751
        %vm765 = vcmp.lt.s32.totalorder %v764, %v755
        %v766 = vsel %vm765, %v764, %v755
        %vm767 = vcmp.lt.s32.totalorder %v766, %v759
        %v768 = vsel %vm767, %v766, %v759
        %v769 = vrot.slane %v768, 4
        %vm770 = vcmp.lt.s32.totalorder %v768, %v769
        %v771 = vsel %vm770, %v768, %v769
        %v772 = vrot.slane %v771, 2
        %vm773 = vcmp.lt.s32.totalorder %v771, %v772
        %v774 = vsel %vm773, %v771, %v772
        %v775 = vrot.slane %v774, 1
        %vm776 = vcmp.lt.s32.totalorder %v774, %v775
        %v777 = vsel %vm776, %v774, %v775
        %vm778 = vcmp.lt.s32.totalorder %v748, %v752
        %v779 = vsel %vm778, %v748, %v752
        %vm780 = vcmp.lt.s32.totalorder %v779, %v756
        %v781 = vsel %vm780, %v779, %v756
        %vm782 = vcmp.lt.s32.totalorder %v781, %v760
        %v783 = vsel %vm782, %v781, %v760
        %v784 = vrot.slane %v783, 4
        %vm785 = vcmp.lt.s32.totalorder %v783, %v784
        %v786 = vsel %vm785, %v783, %v784
        %v787 = vrot.slane %v786, 2
        %vm788 = vcmp.lt.s32.totalorder %v786, %v787
        %v789 = vsel %vm788, %v786, %v787
        %v790 = vrot.slane %v789, 1
        %vm791 = vcmp.lt.s32.totalorder %v789, %v790
        %v792 = vsel %vm791, %v789, %v790
        %vm793 = vcmp.lt.s32.totalorder %v749, %v753
        %v794 = vsel %vm793, %v749, %v753
        %vm795 = vcmp.lt.s32.totalorder %v794, %v757
        %v796 = vsel %vm795, %v794, %v757
        %vm797 = vcmp.lt.s32.totalorder %v796, %v761
        %v798 = vsel %vm797, %v796, %v761
        %v799 = vrot.slane %v798, 4
        %vm800 = vcmp.lt.s32.totalorder %v798, %v799
        %v801 = vsel %vm800, %v798, %v799
        %v802 = vrot.slane %v801, 2
        %vm803 = vcmp.lt.s32.totalorder %v801, %v802
        %v804 = vsel %vm803, %v801, %v802
        %v805 = vrot.slane %v804, 1
        %vm806 = vcmp.lt.s32.totalorder %v804, %v805
        %v807 = vsel %vm806, %v804, %v805
        %vm808 = vcmp.lt.s32.totalorder %v750, %v754
        %v809 = vsel %vm808, %v750, %v754
        %vm810 = vcmp.lt.s32.totalorder %v809, %v758
        %v811 = vsel %vm810, %v809, %v758
        %vm812 = vcmp.lt.s32.totalorder %v811, %v762
        %v813 = vsel %vm812, %v811, %v762
        %v814 = vrot.slane %v813, 4
        %vm815 = vcmp.lt.s32.totalorder %v813, %v814
        %v816 = vsel %vm815, %v813, %v814
        %v817 = vrot.slane %v816, 2
        %vm818 = vcmp.lt.s32.totalorder %v816, %v817
        %v819 = vsel %vm818, %v816, %v817
        %v820 = vrot.slane %v819, 1
        %vm821 = vcmp.lt.s32.totalorder %v819, %v820
        %v822 = vsel %vm821, %v819, %v820
        %vm823 = vcmp.lt.s32.totalorder %v777, 28
        %v824 = vsel %vm823, %v777, 28
        %vm825 = vcmp.lt.s32.totalorder %v792, 28
        %v826 = vsel %vm825, %v792, 28
        %vm827 = vcmp.lt.s32.totalorder %v807, 28
        %v828 = vsel %vm827, %v807, 28
        %vm829 = vcmp.lt.s32.totalorder %v822, 28
        %v830 = vsel %vm829, %v822, 28
        %v835 = vcombine.low %v703, %v712
        %v836 = vcombine.low %v721, %v730
        %v838 = vunpack.c.l.s4 1966171168
        %v839 = vunpack.c.0.s8 %v838
        %v840 = vlaneseq
        %v841 = vshrl.u32 %v840, 7
        %v842 = vsub.s32 %v839, %v841
        %v843 = vrot.slane %v835, %v842
        %v845 = vunpack.c.l.s4 1966171168
        %v846 = vunpack.c.0.s8 %v845
        %v847 = vlaneseq
        %v848 = vshrl.u32 %v847, 7
        %v849 = vsub.s32 %v846, %v848
        %v850 = vrot.slane %v836, %v849
        %v851 = vcombine.low %v843, %v850
        %v853 = vunpack.c.l.s4 1966171168
        %v854 = vunpack.c.0.s8 %v853
        %v855 = vlaneseq
        %v856 = vshrl.u32 %v855, 7
        %v857 = vsub.s32 %v854, %v856
        %v858 = vrot.slane %v851, %v857
        %s860 = scalar_lea.vmem %s202, 2
        %861 = vst.msk [vmem:[%s860] ss:$8 sm:$0xf] %vm407, %v858
        %862 = vst.msk [vmem:[%s860] ss:$8 sm:$0x0] %vm407, %v858
        %v863 = vcombine.low %v824, %v826
        %v864 = vcombine.low %v828, %v830
        %v866 = vunpack.c.l.s4 1966171168
        %v867 = vunpack.c.0.s8 %v866
        %v868 = vlaneseq
        %v869 = vshrl.u32 %v868, 7
        %v870 = vsub.s32 %v867, %v869
        %v871 = vrot.slane %v863, %v870
        %v873 = vunpack.c.l.s4 1966171168
        %v874 = vunpack.c.0.s8 %v873
        %v875 = vlaneseq
        %v876 = vshrl.u32 %v875, 7
        %v877 = vsub.s32 %v874, %v876
        %v878 = vrot.slane %v864, %v877
        %v879 = vcombine.low %v871, %v878
        %v881 = vunpack.c.l.s4 1966171168
        %v882 = vunpack.c.0.s8 %v881
        %v883 = vlaneseq
        %v884 = vshrl.u32 %v883, 7
        %v885 = vsub.s32 %v882, %v884
        %v886 = vrot.slane %v879, %v885
        %s887 = scalar_lea.vmem %s208, 2
        %888 = vst.msk [vmem:[%s887] ss:$8 sm:$0xf] %vm407, %v886
        %889 = vst.msk [vmem:[%s887] ss:$8 sm:$0x0] %vm407, %v886
        %vm890 = vcmp.eq.s32.totalorder %v227, %v824
        %vm891 = vcmp.eq.s32.totalorder %v227, %v826
        %vm892 = vcmp.eq.s32.totalorder %v227, %v828
        %vm893 = vcmp.eq.s32.totalorder %v227, %v830
        %vm894 = vcmp.eq.s32.totalorder %v228, %v824
        %vm895 = vcmp.eq.s32.totalorder %v228, %v826
        %vm896 = vcmp.eq.s32.totalorder %v228, %v828
        %vm897 = vcmp.eq.s32.totalorder %v228, %v830
        %vm898 = vcmp.eq.s32.totalorder %v229, %v824
        %vm899 = vcmp.eq.s32.totalorder %v229, %v826
        %vm900 = vcmp.eq.s32.totalorder %v229, %v828
        %vm901 = vcmp.eq.s32.totalorder %v229, %v830
        %vm902 = vcmp.eq.s32.totalorder %v230, %v824
        %vm903 = vcmp.eq.s32.totalorder %v230, %v826
        %vm904 = vcmp.eq.s32.totalorder %v230, %v828
        %vm905 = vcmp.eq.s32.totalorder %v230, %v830
        %v906 = vsel %vm890, -inf, %v679
        %v907 = vsel %vm891, -inf, %v680
        %v908 = vsel %vm892, -inf, %v681
        %v909 = vsel %vm893, -inf, %v682
        %v910 = vsel %vm894, -inf, %v683
        %v911 = vsel %vm895, -inf, %v684
        %v912 = vsel %vm896, -inf, %v685
        %v913 = vsel %vm897, -inf, %v686
        %v914 = vsel %vm898, -inf, %v687
        %v915 = vsel %vm899, -inf, %v688
        %v916 = vsel %vm900, -inf, %v689
        %v917 = vsel %vm901, -inf, %v690
        %v918 = vsel %vm902, -inf, %v691
        %v919 = vsel %vm903, -inf, %v692
        %v920 = vsel %vm904, -inf, %v693
        %v921 = vsel %vm905, -inf, %v694
        %v922 = vmax.f32 %v906, %v910
        %v923 = vmax.f32 %v922, %v914
        %v924 = vmax.f32 %v923, %v918
        %v925 = vrot.slane %v924, 4
        %v926 = vmax.f32 %v924, %v925
        %v927 = vrot.slane %v926, 2
        %v928 = vmax.f32 %v926, %v927
        %v929 = vrot.slane %v928, 1
        %v930 = vmax.f32 %v928, %v929
        %v931 = vmax.f32 %v907, %v911
        %v932 = vmax.f32 %v931, %v915
        %v933 = vmax.f32 %v932, %v919
        %v934 = vrot.slane %v933, 4
        %v935 = vmax.f32 %v933, %v934
        %v936 = vrot.slane %v935, 2
        %v937 = vmax.f32 %v935, %v936
        %v938 = vrot.slane %v937, 1
        %v939 = vmax.f32 %v937, %v938
        %v940 = vmax.f32 %v908, %v912
        %v941 = vmax.f32 %v940, %v916
        %v942 = vmax.f32 %v941, %v920
        %v943 = vrot.slane %v942, 4
        %v944 = vmax.f32 %v942, %v943
        %v945 = vrot.slane %v944, 2
        %v946 = vmax.f32 %v944, %v945
        %v947 = vrot.slane %v946, 1
        %v948 = vmax.f32 %v946, %v947
        %v949 = vmax.f32 %v909, %v913
        %v950 = vmax.f32 %v949, %v917
        %v951 = vmax.f32 %v950, %v921
        %v952 = vrot.slane %v951, 4
        %v953 = vmax.f32 %v951, %v952
        %v954 = vrot.slane %v953, 2
        %v955 = vmax.f32 %v953, %v954
        %v956 = vrot.slane %v955, 1
        %v957 = vmax.f32 %v955, %v956
        %vm958 = vcmp.eq.f32.partialorder %v906, %v930
        %vm959 = vcmp.eq.f32.partialorder %v907, %v939
        %vm960 = vcmp.eq.f32.partialorder %v908, %v948
        %vm961 = vcmp.eq.f32.partialorder %v909, %v957
        %vm962 = vcmp.eq.f32.partialorder %v910, %v930
        %vm963 = vcmp.eq.f32.partialorder %v911, %v939
        %vm964 = vcmp.eq.f32.partialorder %v912, %v948
        %vm965 = vcmp.eq.f32.partialorder %v913, %v957
        %vm966 = vcmp.eq.f32.partialorder %v914, %v930
        %vm967 = vcmp.eq.f32.partialorder %v915, %v939
        %vm968 = vcmp.eq.f32.partialorder %v916, %v948
        %vm969 = vcmp.eq.f32.partialorder %v917, %v957
        %vm970 = vcmp.eq.f32.partialorder %v918, %v930
        %vm971 = vcmp.eq.f32.partialorder %v919, %v939
        %vm972 = vcmp.eq.f32.partialorder %v920, %v948
        %vm973 = vcmp.eq.f32.partialorder %v921, %v957
        %v974 = vsel %vm958, %v227, 32
        %v975 = vsel %vm959, %v227, 32
        %v976 = vsel %vm960, %v227, 32
        %v977 = vsel %vm961, %v227, 32
        %v978 = vsel %vm962, %v228, 32
        %v979 = vsel %vm963, %v228, 32
        %v980 = vsel %vm964, %v228, 32
        %v981 = vsel %vm965, %v228, 32
        %v982 = vsel %vm966, %v229, 32
        %v983 = vsel %vm967, %v229, 32
        %v984 = vsel %vm968, %v229, 32
        %v985 = vsel %vm969, %v229, 32
        %v986 = vsel %vm970, %v230, 32
        %v987 = vsel %vm971, %v230, 32
        %v988 = vsel %vm972, %v230, 32
        %v989 = vsel %vm973, %v230, 32
        %vm990 = vcmp.lt.s32.totalorder %v974, %v978
        %v991 = vsel %vm990, %v974, %v978
        %vm992 = vcmp.lt.s32.totalorder %v991, %v982
        %v993 = vsel %vm992, %v991, %v982
        %vm994 = vcmp.lt.s32.totalorder %v993, %v986
        %v995 = vsel %vm994, %v993, %v986
        %v996 = vrot.slane %v995, 4
        %vm997 = vcmp.lt.s32.totalorder %v995, %v996
        %v998 = vsel %vm997, %v995, %v996
        %v999 = vrot.slane %v998, 2
        %vm1000 = vcmp.lt.s32.totalorder %v998, %v999
        %v1001 = vsel %vm1000, %v998, %v999
        %v1002 = vrot.slane %v1001, 1
        %vm1003 = vcmp.lt.s32.totalorder %v1001, %v1002
        %v1004 = vsel %vm1003, %v1001, %v1002
        %vm1005 = vcmp.lt.s32.totalorder %v975, %v979
        %v1006 = vsel %vm1005, %v975, %v979
        %vm1007 = vcmp.lt.s32.totalorder %v1006, %v983
        %v1008 = vsel %vm1007, %v1006, %v983
        %vm1009 = vcmp.lt.s32.totalorder %v1008, %v987
        %v1010 = vsel %vm1009, %v1008, %v987
        %v1011 = vrot.slane %v1010, 4
        %vm1012 = vcmp.lt.s32.totalorder %v1010, %v1011
        %v1013 = vsel %vm1012, %v1010, %v1011
        %v1014 = vrot.slane %v1013, 2
        %vm1015 = vcmp.lt.s32.totalorder %v1013, %v1014
        %v1016 = vsel %vm1015, %v1013, %v1014
        %v1017 = vrot.slane %v1016, 1
        %vm1018 = vcmp.lt.s32.totalorder %v1016, %v1017
        %v1019 = vsel %vm1018, %v1016, %v1017
        %vm1020 = vcmp.lt.s32.totalorder %v976, %v980
        %v1021 = vsel %vm1020, %v976, %v980
        %vm1022 = vcmp.lt.s32.totalorder %v1021, %v984
        %v1023 = vsel %vm1022, %v1021, %v984
        %vm1024 = vcmp.lt.s32.totalorder %v1023, %v988
        %v1025 = vsel %vm1024, %v1023, %v988
        %v1026 = vrot.slane %v1025, 4
        %vm1027 = vcmp.lt.s32.totalorder %v1025, %v1026
        %v1028 = vsel %vm1027, %v1025, %v1026
        %v1029 = vrot.slane %v1028, 2
        %vm1030 = vcmp.lt.s32.totalorder %v1028, %v1029
        %v1031 = vsel %vm1030, %v1028, %v1029
        %v1032 = vrot.slane %v1031, 1
        %vm1033 = vcmp.lt.s32.totalorder %v1031, %v1032
        %v1034 = vsel %vm1033, %v1031, %v1032
        %vm1035 = vcmp.lt.s32.totalorder %v977, %v981
        %v1036 = vsel %vm1035, %v977, %v981
        %vm1037 = vcmp.lt.s32.totalorder %v1036, %v985
        %v1038 = vsel %vm1037, %v1036, %v985
        %vm1039 = vcmp.lt.s32.totalorder %v1038, %v989
        %v1040 = vsel %vm1039, %v1038, %v989
        %v1041 = vrot.slane %v1040, 4
        %vm1042 = vcmp.lt.s32.totalorder %v1040, %v1041
        %v1043 = vsel %vm1042, %v1040, %v1041
        %v1044 = vrot.slane %v1043, 2
        %vm1045 = vcmp.lt.s32.totalorder %v1043, %v1044
        %v1046 = vsel %vm1045, %v1043, %v1044
        %v1047 = vrot.slane %v1046, 1
        %vm1048 = vcmp.lt.s32.totalorder %v1046, %v1047
        %v1049 = vsel %vm1048, %v1046, %v1047
        %vm1050 = vcmp.lt.s32.totalorder %v1004, 28
        %v1051 = vsel %vm1050, %v1004, 28
        %vm1052 = vcmp.lt.s32.totalorder %v1019, 28
        %v1053 = vsel %vm1052, %v1019, 28
        %vm1054 = vcmp.lt.s32.totalorder %v1034, 28
        %v1055 = vsel %vm1054, %v1034, 28
        %vm1056 = vcmp.lt.s32.totalorder %v1049, 28
        %v1057 = vsel %vm1056, %v1049, 28
        %v1062 = vcombine.low %v930, %v939
        %v1063 = vcombine.low %v948, %v957
        %v1065 = vunpack.c.l.s4 1966171168
        %v1066 = vunpack.c.0.s8 %v1065
        %v1067 = vlaneseq
        %v1068 = vshrl.u32 %v1067, 7
        %v1069 = vsub.s32 %v1066, %v1068
        %v1070 = vrot.slane %v1062, %v1069
        %v1072 = vunpack.c.l.s4 1966171168
        %v1073 = vunpack.c.0.s8 %v1072
        %v1074 = vlaneseq
        %v1075 = vshrl.u32 %v1074, 7
        %v1076 = vsub.s32 %v1073, %v1075
        %v1077 = vrot.slane %v1063, %v1076
        %v1078 = vcombine.low %v1070, %v1077
        %v1080 = vunpack.c.l.s4 1966171168
        %v1081 = vunpack.c.0.s8 %v1080
        %v1082 = vlaneseq
        %v1083 = vshrl.u32 %v1082, 7
        %v1084 = vsub.s32 %v1081, %v1083
        %v1085 = vrot.slane %v1078, %v1084
        %s1087 = scalar_lea.vmem %s202, 3
        %1088 = vst.msk [vmem:[%s1087] ss:$8 sm:$0xf] %vm407, %v1085
        %1089 = vst.msk [vmem:[%s1087] ss:$8 sm:$0x0] %vm407, %v1085
        %v1090 = vcombine.low %v1051, %v1053
        %v1091 = vcombine.low %v1055, %v1057
        %v1093 = vunpack.c.l.s4 1966171168
        %v1094 = vunpack.c.0.s8 %v1093
        %v1095 = vlaneseq
        %v1096 = vshrl.u32 %v1095, 7
        %v1097 = vsub.s32 %v1094, %v1096
        %v1098 = vrot.slane %v1090, %v1097
        %v1100 = vunpack.c.l.s4 1966171168
        %v1101 = vunpack.c.0.s8 %v1100
        %v1102 = vlaneseq
        %v1103 = vshrl.u32 %v1102, 7
        %v1104 = vsub.s32 %v1101, %v1103
        %v1105 = vrot.slane %v1091, %v1104
        %v1106 = vcombine.low %v1098, %v1105
        %v1108 = vunpack.c.l.s4 1966171168
        %v1109 = vunpack.c.0.s8 %v1108
        %v1110 = vlaneseq
        %v1111 = vshrl.u32 %v1110, 7
        %v1112 = vsub.s32 %v1109, %v1111
        %v1113 = vrot.slane %v1106, %v1112
        %s1114 = scalar_lea.vmem %s208, 3
        %1115 = vst.msk [vmem:[%s1114] ss:$8 sm:$0xf] %vm407, %v1113
        %1116 = vst.msk [vmem:[%s1114] ss:$8 sm:$0x0] %vm407, %v1113
        %vm1117 = vcmp.eq.s32.totalorder %v227, %v1051
        %vm1118 = vcmp.eq.s32.totalorder %v227, %v1053
        %vm1119 = vcmp.eq.s32.totalorder %v227, %v1055
        %vm1120 = vcmp.eq.s32.totalorder %v227, %v1057
        %vm1121 = vcmp.eq.s32.totalorder %v228, %v1051
        %vm1122 = vcmp.eq.s32.totalorder %v228, %v1053
        %vm1123 = vcmp.eq.s32.totalorder %v228, %v1055
        %vm1124 = vcmp.eq.s32.totalorder %v228, %v1057
        %vm1125 = vcmp.eq.s32.totalorder %v229, %v1051
        %vm1126 = vcmp.eq.s32.totalorder %v229, %v1053
        %vm1127 = vcmp.eq.s32.totalorder %v229, %v1055
        %vm1128 = vcmp.eq.s32.totalorder %v229, %v1057
        %vm1129 = vcmp.eq.s32.totalorder %v230, %v1051
        %vm1130 = vcmp.eq.s32.totalorder %v230, %v1053
        %vm1131 = vcmp.eq.s32.totalorder %v230, %v1055
        %vm1132 = vcmp.eq.s32.totalorder %v230, %v1057
        %v1133 = vsel %vm1117, -inf, %v906
        %v1134 = vsel %vm1118, -inf, %v907
        %v1135 = vsel %vm1119, -inf, %v908
        %v1136 = vsel %vm1120, -inf, %v909
        %v1137 = vsel %vm1121, -inf, %v910
        %v1138 = vsel %vm1122, -inf, %v911
        %v1139 = vsel %vm1123, -inf, %v912
        %v1140 = vsel %vm1124, -inf, %v913
        %v1141 = vsel %vm1125, -inf, %v914
        %v1142 = vsel %vm1126, -inf, %v915
        %v1143 = vsel %vm1127, -inf, %v916
        %v1144 = vsel %vm1128, -inf, %v917
        %v1145 = vsel %vm1129, -inf, %v918
        %v1146 = vsel %vm1130, -inf, %v919
        %v1147 = vsel %vm1131, -inf, %v920
        %v1148 = vsel %vm1132, -inf, %v921
        %v1149 = vmax.f32 %v1133, %v1137
        %v1150 = vmax.f32 %v1149, %v1141
        %v1151 = vmax.f32 %v1150, %v1145
        %v1152 = vrot.slane %v1151, 4
        %v1153 = vmax.f32 %v1151, %v1152
        %v1154 = vrot.slane %v1153, 2
        %v1155 = vmax.f32 %v1153, %v1154
        %v1156 = vrot.slane %v1155, 1
        %v1157 = vmax.f32 %v1155, %v1156
        %v1158 = vmax.f32 %v1134, %v1138
        %v1159 = vmax.f32 %v1158, %v1142
        %v1160 = vmax.f32 %v1159, %v1146
        %v1161 = vrot.slane %v1160, 4
        %v1162 = vmax.f32 %v1160, %v1161
        %v1163 = vrot.slane %v1162, 2
        %v1164 = vmax.f32 %v1162, %v1163
        %v1165 = vrot.slane %v1164, 1
        %v1166 = vmax.f32 %v1164, %v1165
        %v1167 = vmax.f32 %v1135, %v1139
        %v1168 = vmax.f32 %v1167, %v1143
        %v1169 = vmax.f32 %v1168, %v1147
        %v1170 = vrot.slane %v1169, 4
        %v1171 = vmax.f32 %v1169, %v1170
        %v1172 = vrot.slane %v1171, 2
        %v1173 = vmax.f32 %v1171, %v1172
        %v1174 = vrot.slane %v1173, 1
        %v1175 = vmax.f32 %v1173, %v1174
        %v1176 = vmax.f32 %v1136, %v1140
        %v1177 = vmax.f32 %v1176, %v1144
        %v1178 = vmax.f32 %v1177, %v1148
        %v1179 = vrot.slane %v1178, 4
        %v1180 = vmax.f32 %v1178, %v1179
        %v1181 = vrot.slane %v1180, 2
        %v1182 = vmax.f32 %v1180, %v1181
        %v1183 = vrot.slane %v1182, 1
        %v1184 = vmax.f32 %v1182, %v1183
        %vm1185 = vcmp.eq.f32.partialorder %v1133, %v1157
        %vm1186 = vcmp.eq.f32.partialorder %v1134, %v1166
        %vm1187 = vcmp.eq.f32.partialorder %v1135, %v1175
        %vm1188 = vcmp.eq.f32.partialorder %v1136, %v1184
        %vm1189 = vcmp.eq.f32.partialorder %v1137, %v1157
        %vm1190 = vcmp.eq.f32.partialorder %v1138, %v1166
        %vm1191 = vcmp.eq.f32.partialorder %v1139, %v1175
        %vm1192 = vcmp.eq.f32.partialorder %v1140, %v1184
        %vm1193 = vcmp.eq.f32.partialorder %v1141, %v1157
        %vm1194 = vcmp.eq.f32.partialorder %v1142, %v1166
        %vm1195 = vcmp.eq.f32.partialorder %v1143, %v1175
        %vm1196 = vcmp.eq.f32.partialorder %v1144, %v1184
        %vm1197 = vcmp.eq.f32.partialorder %v1145, %v1157
        %vm1198 = vcmp.eq.f32.partialorder %v1146, %v1166
        %vm1199 = vcmp.eq.f32.partialorder %v1147, %v1175
        %vm1200 = vcmp.eq.f32.partialorder %v1148, %v1184
        %v1201 = vsel %vm1185, %v227, 32
        %v1202 = vsel %vm1186, %v227, 32
        %v1203 = vsel %vm1187, %v227, 32
        %v1204 = vsel %vm1188, %v227, 32
        %v1205 = vsel %vm1189, %v228, 32
        %v1206 = vsel %vm1190, %v228, 32
        %v1207 = vsel %vm1191, %v228, 32
        %v1208 = vsel %vm1192, %v228, 32
        %v1209 = vsel %vm1193, %v229, 32
        %v1210 = vsel %vm1194, %v229, 32
        %v1211 = vsel %vm1195, %v229, 32
        %v1212 = vsel %vm1196, %v229, 32
        %v1213 = vsel %vm1197, %v230, 32
        %v1214 = vsel %vm1198, %v230, 32
        %v1215 = vsel %vm1199, %v230, 32
        %v1216 = vsel %vm1200, %v230, 32
        %vm1217 = vcmp.lt.s32.totalorder %v1201, %v1205
        %v1218 = vsel %vm1217, %v1201, %v1205
        %vm1219 = vcmp.lt.s32.totalorder %v1218, %v1209
        %v1220 = vsel %vm1219, %v1218, %v1209
        %vm1221 = vcmp.lt.s32.totalorder %v1220, %v1213
        %v1222 = vsel %vm1221, %v1220, %v1213
        %v1223 = vrot.slane %v1222, 4
        %vm1224 = vcmp.lt.s32.totalorder %v1222, %v1223
        %v1225 = vsel %vm1224, %v1222, %v1223
        %v1226 = vrot.slane %v1225, 2
        %vm1227 = vcmp.lt.s32.totalorder %v1225, %v1226
        %v1228 = vsel %vm1227, %v1225, %v1226
        %v1229 = vrot.slane %v1228, 1
        %vm1230 = vcmp.lt.s32.totalorder %v1228, %v1229
        %v1231 = vsel %vm1230, %v1228, %v1229
        %vm1232 = vcmp.lt.s32.totalorder %v1202, %v1206
        %v1233 = vsel %vm1232, %v1202, %v1206
        %vm1234 = vcmp.lt.s32.totalorder %v1233, %v1210
        %v1235 = vsel %vm1234, %v1233, %v1210
        %vm1236 = vcmp.lt.s32.totalorder %v1235, %v1214
        %v1237 = vsel %vm1236, %v1235, %v1214
        %v1238 = vrot.slane %v1237, 4
        %vm1239 = vcmp.lt.s32.totalorder %v1237, %v1238
        %v1240 = vsel %vm1239, %v1237, %v1238
        %v1241 = vrot.slane %v1240, 2
        %vm1242 = vcmp.lt.s32.totalorder %v1240, %v1241
        %v1243 = vsel %vm1242, %v1240, %v1241
        %v1244 = vrot.slane %v1243, 1
        %vm1245 = vcmp.lt.s32.totalorder %v1243, %v1244
        %v1246 = vsel %vm1245, %v1243, %v1244
        %vm1247 = vcmp.lt.s32.totalorder %v1203, %v1207
        %v1248 = vsel %vm1247, %v1203, %v1207
        %vm1249 = vcmp.lt.s32.totalorder %v1248, %v1211
        %v1250 = vsel %vm1249, %v1248, %v1211
        %vm1251 = vcmp.lt.s32.totalorder %v1250, %v1215
        %v1252 = vsel %vm1251, %v1250, %v1215
        %v1253 = vrot.slane %v1252, 4
        %vm1254 = vcmp.lt.s32.totalorder %v1252, %v1253
        %v1255 = vsel %vm1254, %v1252, %v1253
        %v1256 = vrot.slane %v1255, 2
        %vm1257 = vcmp.lt.s32.totalorder %v1255, %v1256
        %v1258 = vsel %vm1257, %v1255, %v1256
        %v1259 = vrot.slane %v1258, 1
        %vm1260 = vcmp.lt.s32.totalorder %v1258, %v1259
        %v1261 = vsel %vm1260, %v1258, %v1259
        %vm1262 = vcmp.lt.s32.totalorder %v1204, %v1208
        %v1263 = vsel %vm1262, %v1204, %v1208
        %vm1264 = vcmp.lt.s32.totalorder %v1263, %v1212
        %v1265 = vsel %vm1264, %v1263, %v1212
        %vm1266 = vcmp.lt.s32.totalorder %v1265, %v1216
        %v1267 = vsel %vm1266, %v1265, %v1216
        %v1268 = vrot.slane %v1267, 4
        %vm1269 = vcmp.lt.s32.totalorder %v1267, %v1268
        %v1270 = vsel %vm1269, %v1267, %v1268
        %v1271 = vrot.slane %v1270, 2
        %vm1272 = vcmp.lt.s32.totalorder %v1270, %v1271
        %v1273 = vsel %vm1272, %v1270, %v1271
        %v1274 = vrot.slane %v1273, 1
        %vm1275 = vcmp.lt.s32.totalorder %v1273, %v1274
        %v1276 = vsel %vm1275, %v1273, %v1274
        %vm1277 = vcmp.lt.s32.totalorder %v1231, 28
        %v1278 = vsel %vm1277, %v1231, 28
        %vm1279 = vcmp.lt.s32.totalorder %v1246, 28
        %v1280 = vsel %vm1279, %v1246, 28
        %vm1281 = vcmp.lt.s32.totalorder %v1261, 28
        %v1282 = vsel %vm1281, %v1261, 28
        %vm1283 = vcmp.lt.s32.totalorder %v1276, 28
        %v1284 = vsel %vm1283, %v1276, 28
        %v1289 = vcombine.low %v1157, %v1166
        %v1290 = vcombine.low %v1175, %v1184
        %v1292 = vunpack.c.l.s4 1966171168
        %v1293 = vunpack.c.0.s8 %v1292
        %v1294 = vlaneseq
        %v1295 = vshrl.u32 %v1294, 7
        %v1296 = vsub.s32 %v1293, %v1295
        %v1297 = vrot.slane %v1289, %v1296
        %v1299 = vunpack.c.l.s4 1966171168
        %v1300 = vunpack.c.0.s8 %v1299
        %v1301 = vlaneseq
        %v1302 = vshrl.u32 %v1301, 7
        %v1303 = vsub.s32 %v1300, %v1302
        %v1304 = vrot.slane %v1290, %v1303
        %v1305 = vcombine.low %v1297, %v1304
        %v1307 = vunpack.c.l.s4 1966171168
        %v1308 = vunpack.c.0.s8 %v1307
        %v1309 = vlaneseq
        %v1310 = vshrl.u32 %v1309, 7
        %v1311 = vsub.s32 %v1308, %v1310
        %v1312 = vrot.slane %v1305, %v1311
        %s1314 = scalar_lea.vmem %s202, 4
        %1315 = vst.msk [vmem:[%s1314] ss:$8 sm:$0xf] %vm407, %v1312
        %1316 = vst.msk [vmem:[%s1314] ss:$8 sm:$0x0] %vm407, %v1312
        %v1317 = vcombine.low %v1278, %v1280
        %v1318 = vcombine.low %v1282, %v1284
        %v1320 = vunpack.c.l.s4 1966171168
        %v1321 = vunpack.c.0.s8 %v1320
        %v1322 = vlaneseq
        %v1323 = vshrl.u32 %v1322, 7
        %v1324 = vsub.s32 %v1321, %v1323
        %v1325 = vrot.slane %v1317, %v1324
        %v1327 = vunpack.c.l.s4 1966171168
        %v1328 = vunpack.c.0.s8 %v1327
        %v1329 = vlaneseq
        %v1330 = vshrl.u32 %v1329, 7
        %v1331 = vsub.s32 %v1328, %v1330
        %v1332 = vrot.slane %v1318, %v1331
        %v1333 = vcombine.low %v1325, %v1332
        %v1335 = vunpack.c.l.s4 1966171168
        %v1336 = vunpack.c.0.s8 %v1335
        %v1337 = vlaneseq
        %v1338 = vshrl.u32 %v1337, 7
        %v1339 = vsub.s32 %v1336, %v1338
        %v1340 = vrot.slane %v1333, %v1339
        %s1341 = scalar_lea.vmem %s208, 4
        %1342 = vst.msk [vmem:[%s1341] ss:$8 sm:$0xf] %vm407, %v1340
        %1343 = vst.msk [vmem:[%s1341] ss:$8 sm:$0x0] %vm407, %v1340
        %s1344 = smul.u32 4, %s14
        %p1345 = scmp.lt.s32.totalorder %s1344, 7
        %s1346 = scalar_select %p1345, %s1344, 7
        %s1347 = smul.addr %s1346, 8
        %s1348 = scalar_lea.vmem %s1, %s1347
        %s1349 = smul.u32 4, %s14
        %p1350 = scmp.lt.s32.totalorder %s1349, 7
        %s1351 = scalar_select %p1350, %s1349, 7
        %s1352 = smul.addr %s1351, 8
        %s1353 = scalar_lea.vmem %s2, %s1352
        // Predicated region
        $region48: #{_topk5_impl.1} parent=42 // pred_check
          %p1354 = pneg %p58
        $region49: #{_topk5_impl.1} parent=42 // pred_check_branch
          %1356 = sbr.rel (%p1354) target = $region51
        $region50: #{_topk5_impl.1} parent=42 // pred_region
          %s1357 = smul.u32 4, %s14
        $region51: #{_topk5_impl.1} parent=42 // pred_fallthru
          _
        // Predicated region
        $region52: #{_topk5_impl.1} parent=42 // pred_check
          %p1358 = pneg %p84
        $region53: #{_topk5_impl.1} parent=42 // pred_check_branch
          %1360 = sbr.rel (%p1358) target = $region55
        $region54: #{_topk5_impl.1} parent=42 // pred_region
          %s1361 = smul.u32 4, %s14
        $region55: #{_topk5_impl.1} parent=42 // pred_fallthru
          _
      $region43: #{_topk5_impl.1} parent=5 // pred_fallthru
        _
      %p1362 = scmp.le.s32.totalorder 2, %s9
      // Predicated region
      $region56: #{_topk5_impl.1} parent=5 // pred_check
        %p1363 = pneg %p1362
      $region57: #{_topk5_impl.1} parent=5 // pred_check_branch
        %1365 = sbr.rel (%p1363) target = $region59
      $region58: #{_topk5_impl.1} parent=5 // pred_region
        %s1366 = ssub.s32 %s9, 2
        // Predicated region
        $region60: #{_topk5_impl.1} parent=58 // pred_check
          %p1367 = pneg %p64
        $region61: #{_topk5_impl.1} parent=58 // pred_check_branch
          %1369 = sbr.rel (%p1367) target = $region63
        $region62: #{_topk5_impl.1} parent=58 // pred_region
          %s1370 = smul.u32 4, %s15
          %p1371 = scmp.lt.s32.totalorder %s1370, 7
          %s1372 = scalar_select %p1371, %s1370, 7
          %s1373 = smul.addr %s1372, 8
          %s1374 = scalar_lea.vmem %s1, %s1373
        $region63: #{_topk5_impl.1} parent=58 // pred_fallthru
          _
        // Predicated region
        $region64: #{_topk5_impl.1} parent=58 // pred_check
          %p1375 = pneg %p90
        $region65: #{_topk5_impl.1} parent=58 // pred_check_branch
          %1377 = sbr.rel (%p1375) target = $region67
        $region66: #{_topk5_impl.1} parent=58 // pred_region
          %s1378 = smul.u32 4, %s15
          %p1379 = scmp.lt.s32.totalorder %s1378, 7
          %s1380 = scalar_select %p1379, %s1378, 7
          %s1381 = smul.addr %s1380, 8
          %s1382 = scalar_lea.vmem %s2, %s1381
        $region67: #{_topk5_impl.1} parent=58 // pred_fallthru
          _
      $region59: #{_topk5_impl.1} parent=5 // pred_fallthru
        _
    $region6: #{_topk5_impl.1} parent=1 // loop_footer
      %s13 = sadd.s32 1, %s9
    $region7: #{_topk5_impl.1} parent=1 // loop_footer_branch
      %8 = sbr.rel target = $region3
    $region8: #{_topk5_impl.1} parent=1 // loop_exit
      _

</llo_original>
